<compile_context>
chip_gen: v5e
topology: v5e:2x2
jax: 0.10.0
libtpu: 0.0.40
codegen_flags: <defaults>
</compile_context>

<pallas_src>
import jax
import jax.numpy as jnp
from jax.experimental import pallas as pl
from jax.experimental.pallas import tpu as pltpu


def _round_up(x: int, m: int) -> int:
    return (x + m - 1) // m * m


# Logical and TPU-padded (lane-aligned) layer dimensions.
D_IN, D_H1, D_H2, D_OUT = 36, 1000, 500, 16
D_H1_P = _round_up(D_H1, 128)      # 1024
D_H2_P = _round_up(D_H2, 128)      # 512
D_OUT_P = _round_up(D_OUT, 128)    # 128
D_BIAS = D_H1_P + D_H2_P + D_OUT_P  # 1664  (packed bias buffer width)

_GRIDLESS_MAX = 512                # rows handled without a grid (all-VMEM fast path)
_BLOCK_MIN = 256                   # minimum grid batch block
_BLOCK_MAX = 1024                  # maximum grid batch block (v6e/v7x sweet spot)
_VMEM_LIMIT = 32 * 1024 * 1024     # covers worst-case ~13 MiB footprint on all chips


def _dqn_blue_kernel(x_ref, w1_ref, w2_ref, w3_ref, b_ref, o_ref):
    """Fused 3-layer MLP forward on one batch tile (all operands in VMEM).

    Dot operands are bf16 (MXU native), accumulation is f32; the f32->bf16
    casts and bias-add/ReLU are free VPU filler under the MXU.
    """
    x = x_ref[...].astype(jnp.bfloat16)                 # in-kernel cast, (blk, 36)
    b1 = b_ref[:, :D_H1_P]                              # static lane-aligned views
    b2 = b_ref[:, D_H1_P:D_H1_P + D_H2_P]
    b3 = b_ref[:, D_H1_P + D_H2_P:]

    # Layer 1: Linear(36 -> 1000) + ReLU
    h1 = jnp.dot(x, w1_ref[...], preferred_element_type=jnp.float32)
    h1 = jnp.maximum(h1 + b1, 0.0)
    # Layer 2: Linear(1000 -> 500) + ReLU
    h2 = jnp.dot(h1.astype(jnp.bfloat16), w2_ref[...],
                 preferred_element_type=jnp.float32)
    h2 = jnp.maximum(h2 + b2, 0.0)
    # Head: Linear(500 -> 16), no activation
    out = jnp.dot(h2.astype(jnp.bfloat16), w3_ref[...],
                  preferred_element_type=jnp.float32)
    o_ref[...] = out + b3


def pack_dqn_blue_params(params):
    """One-time packing (outside the per-call path):
      w1: (36, 1024)  bf16   (output cols padded with zeros; K left at 36)
      w2: (1024, 512) bf16   (zero-padded rows/cols)
      w3: (512, 128)  bf16   (zero-padded rows/cols)
      b : (1, 1664)   f32    [b1 | b2 | b3] lane-concatenated, zero padding
    Zero padding is mathematically inert (padded weight rows/cols and bias
    lanes are zero; padded output lanes are sliced off)."""
    (w1, b1), (w2, b2), (w3, b3) = params

    def pad_w(w, rp, cp):
        r, c = w.shape
        return jnp.zeros((rp, cp), jnp.bfloat16).at[:r, :c].set(
            w.astype(jnp.bfloat16))

    bp = jnp.zeros((1, D_BIAS), jnp.float32)
    bp = bp.at[0, :D_H1].set(b1.astype(jnp.float32))
    bp = bp.at[0, D_H1_P:D_H1_P + D_H2].set(b2.astype(jnp.float32))
    bp = bp.at[0, D_H1_P + D_H2_P:D_H1_P + D_H2_P + D_OUT].set(
        b3.astype(jnp.float32))

    return (pad_w(w1, D_IN, D_H1_P),     # (36, 1024) — unpadded K
            pad_w(w2, D_H1_P, D_H2_P),   # (1024, 512)
            pad_w(w3, D_H2_P, D_OUT_P),  # (512, 128)
            bp)                          # (1, 1664)


@jax.jit
def dqn_blue_forward(x, packed_params):
    """x: (B, 36) float32.  packed_params: output of pack_dqn_blue_params.
    Returns (B, 16) float32, matching DQN_blue.forward."""
    w1p, w2p, w3p, bp = packed_params
    B = x.shape[0]
    x = x.astype(jnp.float32)

    if B <= _GRIDLESS_MAX:
        # Small-batch / latency path: no grid, whole problem resident in VMEM
        # (~1.5 MiB bf16 weights + tiny activations), 5 DMAs, no step overhead.
        Bp = _round_up(max(B, 1), 8)
        xp = jnp.pad(x, ((0, Bp - B), (0, 0))) if Bp != B else x
        out_p = pl.pallas_call(
            _dqn_blue_kernel,
            out_shape=jax.ShapeDtypeStruct((Bp, D_OUT_P), jnp.float32),
            in_specs=[pl.BlockSpec(memory_space=pltpu.MemorySpace.VMEM)] * 5,
            out_specs=pl.BlockSpec(memory_space=pltpu.MemorySpace.VMEM),
        )(xp, w1p, w2p, w3p, bp)
    else:
        # Large-batch path: stream x/out over a parallel batch grid.  Block is
        # chosen so the grid has >=2 steps (uses both v7x TensorCores) while
        # keeping per-step MXU work large relative to the ~0.35 us step
        # overhead on v6e.  Weights/bias use constant index_maps and stay
        # VMEM-resident across steps.
        blk = max(_BLOCK_MIN, min(_BLOCK_MAX, _round_up((B + 1) // 2, 128)))
        n_blocks = pl.cdiv(B, blk)
        Bg = n_blocks * blk
        xp = jnp.pad(x, ((0, Bg - B), (0, 0))) if Bg != B else x
        const = lambda i: (0, 0)
        out_p = pl.pallas_call(
            _dqn_blue_kernel,
            out_shape=jax.ShapeDtypeStruct((Bg, D_OUT_P), jnp.float32),
            grid_spec=pltpu.PrefetchScalarGridSpec(
                num_scalar_prefetch=0,
                grid=(n_blocks,),
                in_specs=[
                    pl.BlockSpec((blk, D_IN), lambda i: (i, 0)),
                    pl.BlockSpec((D_IN, D_H1_P), const),
                    pl.BlockSpec((D_H1_P, D_H2_P), const),
                    pl.BlockSpec((D_H2_P, D_OUT_P), const),
                    pl.BlockSpec((1, D_BIAS), const),
                ],
                out_specs=pl.BlockSpec((blk, D_OUT_P), lambda i: (i, 0)),
            ),
            compiler_params=pltpu.CompilerParams(
                dimension_semantics=("parallel",),
                vmem_limit_bytes=_VMEM_LIMIT),
        )(xp, w1p, w2p, w3p, bp)

    return out_p[:B, :D_OUT]


def init_dqn_blue_params(key):
    """Deterministic init mirroring PyTorch nn.Linear default:
    U(-1/sqrt(fan_in), 1/sqrt(fan_in)) for weight and bias.
    Weights stored as (in_features, out_features) — i.e. W.T of PyTorch."""
    dims = [(D_IN, D_H1), (D_H1, D_H2), (D_H2, D_OUT)]
    params = []
    for (fan_in, fan_out) in dims:
        key, kw, kb = jax.random.split(key, 3)
        bound = 1.0 / (fan_in ** 0.5)
        w = jax.random.uniform(kw, (fan_in, fan_out), jnp.float32,
                               minval=-bound, maxval=bound)
        b = jax.random.uniform(kb, (fan_out,), jnp.float32,
                               minval=-bound, maxval=bound)
        params.append((w, b))
    return tuple(params)


def _reference_forward_f32(x, params):
    """Pure-f32 JAX reference of DQN_blue.forward."""
    (w1, b1), (w2, b2), (w3, b3) = params
    h1 = jax.nn.relu(x @ w1 + b1)
    h2 = jax.nn.relu(h1 @ w2 + b2)
    return h2 @ w3 + b3


def _reference_forward_bf16(x, params):
    """Reference with the same bf16 dot operands / f32 accumulation as the
    Pallas kernel (tight-tolerance comparison target)."""
    (w1, b1), (w2, b2), (w3, b3) = params
    h1 = jnp.dot(x.astype(jnp.bfloat16), w1.astype(jnp.bfloat16),
                 preferred_element_type=jnp.float32) + b1
    h1 = jnp.maximum(h1, 0.0)
    h2 = jnp.dot(h1.astype(jnp.bfloat16), w2.astype(jnp.bfloat16),
                 preferred_element_type=jnp.float32) + b2
    h2 = jnp.maximum(h2, 0.0)
    return jnp.dot(h2.astype(jnp.bfloat16), w3.astype(jnp.bfloat16),
                   preferred_element_type=jnp.float32) + b3


if __name__ == "__main__":
    key = jax.random.PRNGKey(0)
    key, kx, kx2 = jax.random.split(key, 3)

    params = init_dqn_blue_params(key)
    packed = pack_dqn_blue_params(params)        # one-time, outside hot path

    # Small batch of state vectors with 36 features each (gridless path).
    B = 2
    x = jax.random.normal(kx, (B, D_IN), jnp.float32)
    out = jax.block_until_ready(dqn_blue_forward(x, packed))
    assert out.shape == (B, D_OUT), out.shape

    ref_bf16 = _reference_forward_bf16(x, params)
    ref_f32 = _reference_forward_f32(x, params)
    assert jnp.allclose(out, ref_bf16, atol=2e-2, rtol=2e-2), (
        float(jnp.max(jnp.abs(out - ref_bf16))))
    assert jnp.allclose(out, ref_f32, atol=6e-2, rtol=6e-2), (
        float(jnp.max(jnp.abs(out - ref_f32))))

    # Larger batch exercises the parallel batch-grid path (2 grid steps,
    # including padded tail rows that are computed and sliced off).
    B2 = 640
    x2 = jax.random.normal(kx2, (B2, D_IN), jnp.float32)
    out2 = jax.block_until_ready(dqn_blue_forward(x2, packed))
    assert out2.shape == (B2, D_OUT), out2.shape
    ref2 = _reference_forward_bf16(x2, params)
    assert jnp.allclose(out2, ref2, atol=2e-2, rtol=2e-2), (
        float(jnp.max(jnp.abs(out2 - ref2))))

    print("KERNEL_OK")
</pallas_src>

<mosaic_0001>
module attributes {stable_mosaic.version = 11 : i64} {
  func.func @_dqn_blue_kernel(%arg0: memref<8x36xf32, #tpu.memory_space<vmem>>, %arg1: memref<36x1024xbf16, #tpu.memory_space<vmem>>, %arg2: memref<1024x512xbf16, #tpu.memory_space<vmem>>, %arg3: memref<512x128xbf16, #tpu.memory_space<vmem>>, %arg4: memref<1x1664xf32, #tpu.memory_space<vmem>>, %arg5: memref<8x128xf32, #tpu.memory_space<vmem>>) attributes {dimension_semantics = [], scalar_prefetch = 0 : i64, scratch_operands = 0 : i64, tpu.core_type = #tpu.core_type<tc>} {
    %c0 = arith.constant 0 : index
    %c0_0 = arith.constant 0 : index
    %0 = vector.load %arg0[%c0, %c0_0] : memref<8x36xf32, #tpu.memory_space<vmem>>, vector<8x36xf32>
    %1 = arith.truncf %0 : vector<8x36xf32> to vector<8x36xbf16>
    %c0_1 = arith.constant 0 : index
    %c0_2 = arith.constant 0 : index
    %2 = vector.load %arg4[%c0_1, %c0_2] : memref<1x1664xf32, #tpu.memory_space<vmem>>, vector<1x1024xf32>
    %c0_3 = arith.constant 0 : index
    %c1024 = arith.constant 1024 : index
    %3 = vector.load %arg4[%c0_3, %c1024] : memref<1x1664xf32, #tpu.memory_space<vmem>>, vector<1x512xf32>
    %c0_4 = arith.constant 0 : index
    %c1536 = arith.constant 1536 : index
    %4 = vector.load %arg4[%c0_4, %c1536] : memref<1x1664xf32, #tpu.memory_space<vmem>>, vector<1x128xf32>
    %c0_5 = arith.constant 0 : index
    %c0_6 = arith.constant 0 : index
    %5 = vector.load %arg1[%c0_5, %c0_6] : memref<36x1024xbf16, #tpu.memory_space<vmem>>, vector<36x1024xbf16>
    %cst = arith.constant dense<0.000000e+00> : vector<8x1024xf32>
    %6 = tpu.matmul %1, %5, %cst {dimension_numbers = #tpu.dot_dimension_numbers<[1], [0], [0], [1], [0, 0, 1, 1], [], []>} : vector<8x36xbf16>, vector<36x1024xbf16>, vector<8x1024xf32> -> vector<8x1024xf32>
    %7 = vector.broadcast %2 : vector<1x1024xf32> to vector<8x1024xf32>
    %8 = arith.addf %6, %7 : vector<8x1024xf32>
    %cst_7 = arith.constant 0.000000e+00 : f32
    %9 = vector.broadcast %cst_7 : f32 to vector<8x1024xf32>
    %10 = arith.maximumf %8, %9 : vector<8x1024xf32>
    %11 = arith.truncf %10 : vector<8x1024xf32> to vector<8x1024xbf16>
    %c0_8 = arith.constant 0 : index
    %c0_9 = arith.constant 0 : index
    %12 = vector.load %arg2[%c0_8, %c0_9] : memref<1024x512xbf16, #tpu.memory_space<vmem>>, vector<1024x512xbf16>
    %cst_10 = arith.constant dense<0.000000e+00> : vector<8x512xf32>
    %13 = tpu.matmul %11, %12, %cst_10 {dimension_numbers = #tpu.dot_dimension_numbers<[1], [0], [0], [1], [0, 0, 1, 1], [], []>} : vector<8x1024xbf16>, vector<1024x512xbf16>, vector<8x512xf32> -> vector<8x512xf32>
    %14 = vector.broadcast %3 : vector<1x512xf32> to vector<8x512xf32>
    %15 = arith.addf %13, %14 : vector<8x512xf32>
    %cst_11 = arith.constant 0.000000e+00 : f32
    %16 = vector.broadcast %cst_11 : f32 to vector<8x512xf32>
    %17 = arith.maximumf %15, %16 : vector<8x512xf32>
    %18 = arith.truncf %17 : vector<8x512xf32> to vector<8x512xbf16>
    %c0_12 = arith.constant 0 : index
    %c0_13 = arith.constant 0 : index
    %19 = vector.load %arg3[%c0_12, %c0_13] : memref<512x128xbf16, #tpu.memory_space<vmem>>, vector<512x128xbf16>
    %cst_14 = arith.constant dense<0.000000e+00> : vector<8x128xf32>
    %20 = tpu.matmul %18, %19, %cst_14 {dimension_numbers = #tpu.dot_dimension_numbers<[1], [0], [0], [1], [0, 0, 1, 1], [], []>} : vector<8x512xbf16>, vector<512x128xbf16>, vector<8x128xf32> -> vector<8x128xf32>
    %21 = vector.broadcast %4 : vector<1x128xf32> to vector<8x128xf32>
    %22 = arith.addf %20, %21 : vector<8x128xf32>
    %c0_15 = arith.constant 0 : index
    %c0_16 = arith.constant 0 : index
    %23 = vector.load %arg5[%c0_15, %c0_16] : memref<8x128xf32, #tpu.memory_space<vmem>>, vector<8x128xf32>
    tpu.vector_store %arg5[%c0_15, %c0_16], %22 {strides = array<i32>} : memref<8x128xf32, #tpu.memory_space<vmem>>, vector<8x128xf32>,
    return
  }
}

</mosaic_0001>

<llo_original>
// kernel: dqn_blue_forward.1
$region0: #{dqn_blue_forward.1}
  #allocation0 [shape = 'u32[]', space=smem, size = 0x4, offset = 0x4, fixed_abs, tag = 'smem constant byte address 0x4 - core index']
  #allocation1 [shape = 'u32[72,128]{1,0:T(1,128)}', space=vmem, size = 0x9000, scoped, tag = 'internal scratch']
  %s0 = inlined_call_operand.vmem [shape: f32[8,36], index: 0, kind: input, shape index: {}]
  %s1 = inlined_call_operand.hbm [shape: bf16[36,1024], index: 1, kind: input, shape index: {}]
  %s2 = inlined_call_operand.hbm [shape: bf16[1024,512], index: 2, kind: input, shape index: {}]
  %s3 = inlined_call_operand.hbm [shape: bf16[512,128], index: 3, kind: input, shape index: {}]
  %s4 = inlined_call_operand.vmem [shape: f32[1,1664], index: 4, kind: input, shape index: {}]
  %s5 = inlined_call_operand.vmem [shape: f32[8,128], index: 5, kind: output, shape index: {}]
  %s6 = sld [smem:[#allocation0]]
  $region42: #{dqn_blue_forward.1} parent=0
    _
  %s8 = ssub.s32 1, %s6
  %s9 = scalar_select 0, %s8, %s6
  $region1: #{dqn_blue_forward.1} parent=0
    #allocation2 [shape = 'u8[81920]{0}', space=vmem, size = 0x14000, scoped, tag = 'input window, operand 1, single buffered']
    #allocation3 [shape = 's32[1]{0}', space=sflag, size = 0x4, scoped, tag = 'scoped memory for dqn_blue_forward.1']
    #allocation4 [shape = 'u8[1048576]{0}', space=vmem, size = 0x100000, scoped, tag = 'input window, operand 2, single buffered']
    #allocation5 [shape = 's32[1]{0}', space=sflag, size = 0x4, scoped, tag = 'scoped memory for dqn_blue_forward.1']
    #allocation6 [shape = 'u8[131072]{0}', space=vmem, size = 0x20000, scoped, tag = 'input window, operand 3, single buffered']
    %10 = vsyncpa [#allocation3], 0
    %11 = vsyncpa [#allocation5], 0
    // Predicated region
    $region2: #{dqn_blue_forward.1} parent=1 // pred_check
      _
    $region3: #{dqn_blue_forward.1} parent=1 // pred_check_branch
      %13 = sbr.rel (0) target = $region5
    $region4: #{dqn_blue_forward.1} parent=1 // pred_region
      _
    $region5: #{dqn_blue_forward.1} parent=1 // pred_fallthru
      _
    // Predicated region
    $region6: #{dqn_blue_forward.1} parent=1 // pred_check
      _
    $region7: #{dqn_blue_forward.1} parent=1 // pred_check_branch
      %15 = sbr.rel (0) target = $region9
    $region8: #{dqn_blue_forward.1} parent=1 // pred_region
      %17 = vsyncadd [#allocation3], 0
      %s18 = sshll.u32 %s1, 4
      %s19 = int_to_ptr.hbm [resolvable:$true] %s18
      %s20 = sshll.u32 [#allocation2], 4
      %s21 = int_to_ptr.vmem [resolvable:$true] %s20
      %26 = dma.hbm_to_vmem [thread:$0]  %s19, 2560, %s21, [#allocation3], 512, 512, 32
    $region9: #{dqn_blue_forward.1} parent=1 // pred_fallthru
      _
    // Predicated region
    $region10: #{dqn_blue_forward.1} parent=1 // pred_check
      _
    $region11: #{dqn_blue_forward.1} parent=1 // pred_check_branch
      %28 = sbr.rel (0) target = $region13
    $region12: #{dqn_blue_forward.1} parent=1 // pred_region
      %30 = vsyncadd [#allocation5], 0
      %s31 = sshll.u32 %s2, 4
      %s32 = int_to_ptr.hbm [resolvable:$true] %s31
      %s33 = sshll.u32 [#allocation4], 4
      %s34 = int_to_ptr.vmem [resolvable:$true] %s33
      %39 = dma.hbm_to_vmem [thread:$0]  %s32, 32768, %s34, [#allocation5], 256, 256, 16
    $region13: #{dqn_blue_forward.1} parent=1 // pred_fallthru
      _
    // Predicated region
    $region14: #{dqn_blue_forward.1} parent=1 // pred_check
      _
    $region15: #{dqn_blue_forward.1} parent=1 // pred_check_branch
      %41 = sbr.rel (0) target = $region17
    $region16: #{dqn_blue_forward.1} parent=1 // pred_region
      %43 = vsyncadd [#allocation5], 0
      %s44 = sshll.u32 %s3, 4
      %s45 = int_to_ptr.hbm [resolvable:$true] %s44
      %s46 = sshll.u32 [#allocation6], 4
      %s47 = int_to_ptr.vmem [resolvable:$true] %s46
      %52 = dma.hbm_to_vmem [thread:$0]  %s45, 4096, %s47, [#allocation5], 64, 64, 4
    $region17: #{dqn_blue_forward.1} parent=1 // pred_fallthru
      _
    // Predicated region
    $region18: #{dqn_blue_forward.1} parent=1 // pred_check
      _
    $region19: #{dqn_blue_forward.1} parent=1 // pred_check_branch
      %54 = sbr.rel (0) target = $region21
    $region20: #{dqn_blue_forward.1} parent=1 // pred_region
      _
    $region21: #{dqn_blue_forward.1} parent=1 // pred_fallthru
      _
    // Predicated region
    $region22: #{dqn_blue_forward.1} parent=1 // pred_check
      _
    $region23: #{dqn_blue_forward.1} parent=1 // pred_check_branch
      %56 = sbr.rel (0) target = $region25
    $region24: #{dqn_blue_forward.1} parent=1 // pred_region
      %58 = dma.done [#allocation3], 2560
    $region25: #{dqn_blue_forward.1} parent=1 // pred_fallthru
      _
    // Predicated region
    $region26: #{dqn_blue_forward.1} parent=1 // pred_check
      _
    $region27: #{dqn_blue_forward.1} parent=1 // pred_check_branch
      %60 = sbr.rel (0) target = $region29
    $region28: #{dqn_blue_forward.1} parent=1 // pred_region
      %62 = dma.done [#allocation5], 32768
    $region29: #{dqn_blue_forward.1} parent=1 // pred_fallthru
      _
    // Predicated region
    $region30: #{dqn_blue_forward.1} parent=1 // pred_check
      _
    $region31: #{dqn_blue_forward.1} parent=1 // pred_check_branch
      %64 = sbr.rel (0) target = $region33
    $region32: #{dqn_blue_forward.1} parent=1 // pred_region
      %66 = dma.done [#allocation5], 4096
    $region33: #{dqn_blue_forward.1} parent=1 // pred_fallthru
      _
    %v68 = vld [vmem:[%s0] sm:$0xff]
    %v69 = vpack.c.bf16 %v68, %v68
    %v70 = vld [vmem:[%s4] sm:$0xff]
    %v71 = vld [vmem:[%s4 + $0x8] sm:$0xf]
    %v72 = vld [vmem:[%s4 + $0xc] sm:$0x1]
    %v73 = vld [vmem:[#allocation2] sm:$0xff]
    %v74 = vld [vmem:[#allocation2 + $0x8] sm:$0xff]
    %v75 = vld [vmem:[#allocation2 + $0x10] sm:$0xff]
    %v76 = vld [vmem:[#allocation2 + $0x18] sm:$0xff]
    %v77 = vld [vmem:[#allocation2 + $0x20] sm:$0xff]
    %v78 = vld [vmem:[#allocation2 + $0x28] sm:$0xff]
    %v79 = vld [vmem:[#allocation2 + $0x30] sm:$0xff]
    %v80 = vld [vmem:[#allocation2 + $0x38] sm:$0xff]
    %v81 = vld [vmem:[#allocation2 + $0x40] sm:$0xff]
    %v82 = vld [vmem:[#allocation2 + $0x48] sm:$0xff]
    %v83 = vld [vmem:[#allocation2 + $0x50] sm:$0xff]
    %v84 = vld [vmem:[#allocation2 + $0x58] sm:$0xff]
    %v85 = vld [vmem:[#allocation2 + $0x60] sm:$0xff]
    %v86 = vld [vmem:[#allocation2 + $0x68] sm:$0xff]
    %v87 = vld [vmem:[#allocation2 + $0x70] sm:$0xff]
    %v88 = vld [vmem:[#allocation2 + $0x78] sm:$0xff]
    %v89 = vld [vmem:[#allocation2 + $0x80] sm:$0x33]
    %v90 = vld [vmem:[#allocation2 + $0x88] sm:$0x33]
    %v91 = vld [vmem:[#allocation2 + $0x90] sm:$0x33]
    %v92 = vld [vmem:[#allocation2 + $0x98] sm:$0x33]
    %v94 = vperm.slane %v70, 0
    %v95 = vperm.slane %v70, 1
    %v96 = vperm.slane %v70, 2
    %v97 = vperm.slane %v70, 3
    %v98 = vperm.slane %v70, 4
    %v99 = vperm.slane %v70, 5
    %v100 = vperm.slane %v70, 6
    %v101 = vperm.slane %v70, 7
    %v130 = vunpack.c.l.b16 %v73
    %v131 = vunpack.c.h.b16 %v73
    %v132 = vunpack.c.l.b16 %v74
    %v133 = vunpack.c.h.b16 %v74
    %v134 = vunpack.c.l.b16 %v75
    %v135 = vunpack.c.h.b16 %v75
    %v136 = vunpack.c.l.b16 %v76
    %v137 = vunpack.c.h.b16 %v76
    %v138 = vunpack.c.l.b16 %v77
    %v139 = vunpack.c.h.b16 %v77
    %v140 = vunpack.c.l.b16 %v78
    %v141 = vunpack.c.h.b16 %v78
    %v142 = vunpack.c.l.b16 %v79
    %v143 = vunpack.c.h.b16 %v79
    %v144 = vunpack.c.l.b16 %v80
    %v145 = vunpack.c.h.b16 %v80
    %v146 = vunpack.c.l.b16 %v81
    %v147 = vunpack.c.h.b16 %v81
    %v148 = vunpack.c.l.b16 %v82
    %v149 = vunpack.c.h.b16 %v82
    %v150 = vunpack.c.l.b16 %v83
    %v151 = vunpack.c.h.b16 %v83
    %v152 = vunpack.c.l.b16 %v84
    %v153 = vunpack.c.h.b16 %v84
    %v154 = vunpack.c.l.b16 %v85
    %v155 = vunpack.c.h.b16 %v85
    %v156 = vunpack.c.l.b16 %v86
    %v157 = vunpack.c.h.b16 %v86
    %v158 = vunpack.c.l.b16 %v87
    %v159 = vunpack.c.h.b16 %v87
    %v160 = vunpack.c.l.b16 %v88
    %v161 = vunpack.c.h.b16 %v88
    %v162 = vunpack.c.l.b16 %v89
    %v163 = vunpack.c.h.b16 %v89
    %v164 = vunpack.c.l.b16 %v90
    %v165 = vunpack.c.h.b16 %v90
    %v166 = vunpack.c.l.b16 %v91
    %v167 = vunpack.c.h.b16 %v91
    %v168 = vunpack.c.l.b16 %v92
    %v169 = vunpack.c.h.b16 %v92
    %v170 = vpack.c.b16 %v138, %v130
    %v171 = vpack.c.b16 %v139, %v131
    %v172 = vpack.c.b16 %v140, %v132
    %v173 = vpack.c.b16 %v141, %v133
    %v174 = vpack.c.b16 %v142, %v134
    %v175 = vpack.c.b16 %v143, %v135
    %v176 = vpack.c.b16 %v144, %v136
    %v177 = vpack.c.b16 %v145, %v137
    %v178 = vpack.c.b16 %v154, %v146
    %v179 = vpack.c.b16 %v155, %v147
    %v180 = vpack.c.b16 %v156, %v148
    %v181 = vpack.c.b16 %v157, %v149
    %v182 = vpack.c.b16 %v158, %v150
    %v183 = vpack.c.b16 %v159, %v151
    %v184 = vpack.c.b16 %v160, %v152
    %v185 = vpack.c.b16 %v161, %v153
    %v186 = vpack.c.b16 %v162, %v162
    %v187 = vpack.c.b16 %v163, %v163
    %v188 = vpack.c.b16 %v164, %v164
    %v189 = vpack.c.b16 %v165, %v165
    %v190 = vpack.c.b16 %v166, %v166
    %v191 = vpack.c.b16 %v167, %v167
    %v192 = vpack.c.b16 %v168, %v168
    %v193 = vpack.c.b16 %v169, %v169
    %vm210 = vcmask 293888
    %v212 = vsel %vm210, %v69, 0
    %vm214 = vcmask 1041408
    %v216 = vsel %vm214, %v186, 0
    %v219 = vsel %vm214, %v187, 0
    %v222 = vsel %vm214, %v188, 0
    %v225 = vsel %vm214, %v189, 0
    %v228 = vsel %vm214, %v190, 0
    %v231 = vsel %vm214, %v191, 0
    %v234 = vsel %vm214, %v192, 0
    %v237 = vsel %vm214, %v193, 0
    %239 = vmatpush.bf16.msra.mxu0 0
    %240 = vmatpush.bf16.msra.mxu0 0
    %241 = vmatpush.bf16.msra.mxu0 0
    %242 = vmatpush.bf16.msra.mxu0 0
    %243 = vmatpush.bf16.msra.mxu0 0
    %244 = vmatpush.bf16.msra.mxu0 %v216
    %245 = vmatpush.bf16.msra.mxu0 %v178
    %246 = vmatpush.bf16.msra.mxu0 %v170
    %247 = vmatmul.bf16.gmra.mxu0 %v212
    %v248 = vpop.f32.mrf.mxu0
    %v249 = vadd.f32 %v94, %v248
    %v250 = vpop.f32.mrf.mxu0
    %251 = vdwg.mxu0
    %252 = vmatpush.bf16.msra.mxu0 0
    %253 = vmatpush.bf16.msra.mxu0 0
    %254 = vmatpush.bf16.msra.mxu0 0
    %255 = vmatpush.bf16.msra.mxu0 0
    %256 = vmatpush.bf16.msra.mxu0 0
    %257 = vmatpush.bf16.msra.mxu0 %v219
    %258 = vmatpush.bf16.msra.mxu0 %v179
    %259 = vmatpush.bf16.msra.mxu0 %v171
    %260 = vmatmul.bf16.gmra.mxu0 %v212
    %v261 = vpop.f32.mrf.mxu0
    %v262 = vadd.f32 %v95, %v261
    %v263 = vpop.f32.mrf.mxu0
    %264 = vdwg.mxu0
    %265 = vmatpush.bf16.msra.mxu0 0
    %266 = vmatpush.bf16.msra.mxu0 0
    %267 = vmatpush.bf16.msra.mxu0 0
    %268 = vmatpush.bf16.msra.mxu0 0
    %269 = vmatpush.bf16.msra.mxu0 0
    %270 = vmatpush.bf16.msra.mxu0 %v222
    %271 = vmatpush.bf16.msra.mxu0 %v180
    %272 = vmatpush.bf16.msra.mxu0 %v172
    %273 = vmatmul.bf16.gmra.mxu0 %v212
    %v274 = vpop.f32.mrf.mxu0
    %v275 = vadd.f32 %v96, %v274
    %v276 = vpop.f32.mrf.mxu0
    %277 = vdwg.mxu0
    %278 = vmatpush.bf16.msra.mxu0 0
    %279 = vmatpush.bf16.msra.mxu0 0
    %280 = vmatpush.bf16.msra.mxu0 0
    %281 = vmatpush.bf16.msra.mxu0 0
    %282 = vmatpush.bf16.msra.mxu0 0
    %283 = vmatpush.bf16.msra.mxu0 %v225
    %284 = vmatpush.bf16.msra.mxu0 %v181
    %285 = vmatpush.bf16.msra.mxu0 %v173
    %286 = vmatmul.bf16.gmra.mxu0 %v212
    %v287 = vpop.f32.mrf.mxu0
    %v288 = vadd.f32 %v97, %v287
    %v289 = vpop.f32.mrf.mxu0
    %290 = vdwg.mxu0
    %291 = vmatpush.bf16.msra.mxu0 0
    %292 = vmatpush.bf16.msra.mxu0 0
    %293 = vmatpush.bf16.msra.mxu0 0
    %294 = vmatpush.bf16.msra.mxu0 0
    %295 = vmatpush.bf16.msra.mxu0 0
    %296 = vmatpush.bf16.msra.mxu0 %v228
    %297 = vmatpush.bf16.msra.mxu0 %v182
    %298 = vmatpush.bf16.msra.mxu0 %v174
    %299 = vmatmul.bf16.gmra.mxu0 %v212
    %v300 = vpop.f32.mrf.mxu0
    %v301 = vadd.f32 %v98, %v300
    %v302 = vpop.f32.mrf.mxu0
    %303 = vdwg.mxu0
    %304 = vmatpush.bf16.msra.mxu0 0
    %305 = vmatpush.bf16.msra.mxu0 0
    %306 = vmatpush.bf16.msra.mxu0 0
    %307 = vmatpush.bf16.msra.mxu0 0
    %308 = vmatpush.bf16.msra.mxu0 0
    %309 = vmatpush.bf16.msra.mxu0 %v231
    %310 = vmatpush.bf16.msra.mxu0 %v183
    %311 = vmatpush.bf16.msra.mxu0 %v175
    %312 = vmatmul.bf16.gmra.mxu0 %v212
    %v313 = vpop.f32.mrf.mxu0
    %v314 = vadd.f32 %v99, %v313
    %v315 = vpop.f32.mrf.mxu0
    %316 = vdwg.mxu0
    %317 = vmatpush.bf16.msra.mxu0 0
    %318 = vmatpush.bf16.msra.mxu0 0
    %319 = vmatpush.bf16.msra.mxu0 0
    %320 = vmatpush.bf16.msra.mxu0 0
    %321 = vmatpush.bf16.msra.mxu0 0
    %322 = vmatpush.bf16.msra.mxu0 %v234
    %323 = vmatpush.bf16.msra.mxu0 %v184
    %324 = vmatpush.bf16.msra.mxu0 %v176
    %325 = vmatmul.bf16.gmra.mxu0 %v212
    %v326 = vpop.f32.mrf.mxu0
    %v327 = vadd.f32 %v100, %v326
    %v328 = vpop.f32.mrf.mxu0
    %329 = vdwg.mxu0
    %330 = vmatpush.bf16.msra.mxu0 0
    %331 = vmatpush.bf16.msra.mxu0 0
    %332 = vmatpush.bf16.msra.mxu0 0
    %333 = vmatpush.bf16.msra.mxu0 0
    %334 = vmatpush.bf16.msra.mxu0 0
    %335 = vmatpush.bf16.msra.mxu0 %v237
    %336 = vmatpush.bf16.msra.mxu0 %v185
    %337 = vmatpush.bf16.msra.mxu0 %v177
    %338 = vmatmul.bf16.gmra.mxu0 %v212
    %v339 = vpop.f32.mrf.mxu0
    %v340 = vadd.f32 %v101, %v339
    %v341 = vpop.f32.mrf.mxu0
    %342 = vdwg.mxu0
    %v343 = vmax.f32 %v249, 0.0
    %v344 = vmax.f32 %v262, 0.0
    %v345 = vmax.f32 %v275, 0.0
    %v346 = vmax.f32 %v288, 0.0
    %v347 = vmax.f32 %v301, 0.0
    %v348 = vmax.f32 %v314, 0.0
    %v349 = vmax.f32 %v327, 0.0
    %v350 = vmax.f32 %v340, 0.0
    %v351 = vpack.c.bf16 %v343, %v343
    %v352 = vpack.c.bf16 %v344, %v344
    %v353 = vpack.c.bf16 %v345, %v345
    %v354 = vpack.c.bf16 %v346, %v346
    %v355 = vpack.c.bf16 %v347, %v347
    %v356 = vpack.c.bf16 %v348, %v348
    %v357 = vpack.c.bf16 %v349, %v349
    %v358 = vpack.c.bf16 %v350, %v350
    %v359 = vld [vmem:[#allocation4] sm:$0xff]
    %v360 = vld [vmem:[#allocation4 + $0x8] sm:$0xff]
    %v361 = vld [vmem:[#allocation4 + $0x10] sm:$0xff]
    %v362 = vld [vmem:[#allocation4 + $0x18] sm:$0xff]
    %v363 = vld [vmem:[#allocation4 + $0x20] sm:$0xff]
    %v364 = vld [vmem:[#allocation4 + $0x28] sm:$0xff]
    %v365 = vld [vmem:[#allocation4 + $0x30] sm:$0xff]
    %v366 = vld [vmem:[#allocation4 + $0x38] sm:$0xff]
    %v367 = vld [vmem:[#allocation4 + $0x40] sm:$0xff]
    %v368 = vld [vmem:[#allocation4 + $0x48] sm:$0xff]
    %v369 = vld [vmem:[#allocation4 + $0x50] sm:$0xff]
    %v370 = vld [vmem:[#allocation4 + $0x58] sm:$0xff]
    %v371 = vld [vmem:[#allocation4 + $0x60] sm:$0xff]
    %v372 = vld [vmem:[#allocation4 + $0x68] sm:$0xff]
    %v373 = vld [vmem:[#allocation4 + $0x70] sm:$0xff]
    %v374 = vld [vmem:[#allocation4 + $0x78] sm:$0xff]
    %v375 = vld [vmem:[#allocation4 + $0x80] sm:$0xff]
    %v376 = vld [vmem:[#allocation4 + $0x88] sm:$0xff]
    %v377 = vld [vmem:[#allocation4 + $0x90] sm:$0xff]
    %v378 = vld [vmem:[#allocation4 + $0x98] sm:$0xff]
    %v379 = vld [vmem:[#allocation4 + $0xa0] sm:$0xff]
    %v380 = vld [vmem:[#allocation4 + $0xa8] sm:$0xff]
    %v381 = vld [vmem:[#allocation4 + $0xb0] sm:$0xff]
    %v382 = vld [vmem:[#allocation4 + $0xb8] sm:$0xff]
    %v383 = vld [vmem:[#allocation4 + $0xc0] sm:$0xff]
    %v384 = vld [vmem:[#allocation4 + $0xc8] sm:$0xff]
    %v385 = vld [vmem:[#allocation4 + $0xd0] sm:$0xff]
    %v386 = vld [vmem:[#allocation4 + $0xd8] sm:$0xff]
    %v387 = vld [vmem:[#allocation4 + $0xe0] sm:$0xff]
    %v388 = vld [vmem:[#allocation4 + $0xe8] sm:$0xff]
    %v389 = vld [vmem:[#allocation4 + $0xf0] sm:$0xff]
    %v390 = vld [vmem:[#allocation4 + $0xf8] sm:$0xff]
    %v391 = vld [vmem:[#allocation4 + $0x100] sm:$0xff]
    %v392 = vld [vmem:[#allocation4 + $0x108] sm:$0xff]
    %v393 = vld [vmem:[#allocation4 + $0x110] sm:$0xff]
    %v394 = vld [vmem:[#allocation4 + $0x118] sm:$0xff]
    %v395 = vld [vmem:[#allocation4 + $0x120] sm:$0xff]
    %v396 = vld [vmem:[#allocation4 + $0x128] sm:$0xff]
    %v397 = vld [vmem:[#allocation4 + $0x130] sm:$0xff]
    %v398 = vld [vmem:[#allocation4 + $0x138] sm:$0xff]
    %v399 = vld [vmem:[#allocation4 + $0x140] sm:$0xff]
    %v400 = vld [vmem:[#allocation4 + $0x148] sm:$0xff]
    %v401 = vld [vmem:[#allocation4 + $0x150] sm:$0xff]
    %v402 = vld [vmem:[#allocation4 + $0x158] sm:$0xff]
    %v403 = vld [vmem:[#allocation4 + $0x160] sm:$0xff]
    %v404 = vld [vmem:[#allocation4 + $0x168] sm:$0xff]
    %v405 = vld [vmem:[#allocation4 + $0x170] sm:$0xff]
    %v406 = vld [vmem:[#allocation4 + $0x178] sm:$0xff]
    %v407 = vld [vmem:[#allocation4 + $0x180] sm:$0xff]
    %v408 = vld [vmem:[#allocation4 + $0x188] sm:$0xff]
    %v409 = vld [vmem:[#allocation4 + $0x190] sm:$0xff]
    %v410 = vld [vmem:[#allocation4 + $0x198] sm:$0xff]
    %v411 = vld [vmem:[#allocation4 + $0x1a0] sm:$0xff]
    %v412 = vld [vmem:[#allocation4 + $0x1a8] sm:$0xff]
    %v413 = vld [vmem:[#allocation4 + $0x1b0] sm:$0xff]
    %v414 = vld [vmem:[#allocation4 + $0x1b8] sm:$0xff]
    %v415 = vld [vmem:[#allocation4 + $0x1c0] sm:$0xff]
    %v416 = vld [vmem:[#allocation4 + $0x1c8] sm:$0xff]
    %v417 = vld [vmem:[#allocation4 + $0x1d0] sm:$0xff]
    %v418 = vld [vmem:[#allocation4 + $0x1d8] sm:$0xff]
    %v419 = vld [vmem:[#allocation4 + $0x1e0] sm:$0xff]
    %v420 = vld [vmem:[#allocation4 + $0x1e8] sm:$0xff]
    %v421 = vld [vmem:[#allocation4 + $0x1f0] sm:$0xff]
    %v422 = vld [vmem:[#allocation4 + $0x1f8] sm:$0xff]
    %v423 = vld [vmem:[#allocation4 + $0x200] sm:$0xff]
    %v424 = vld [vmem:[#allocation4 + $0x208] sm:$0xff]
    %v425 = vld [vmem:[#allocation4 + $0x210] sm:$0xff]
    %v426 = vld [vmem:[#allocation4 + $0x218] sm:$0xff]
    %v427 = vld [vmem:[#allocation4 + $0x220] sm:$0xff]
    %v428 = vld [vmem:[#allocation4 + $0x228] sm:$0xff]
    %v429 = vld [vmem:[#allocation4 + $0x230] sm:$0xff]
    %v430 = vld [vmem:[#allocation4 + $0x238] sm:$0xff]
    %v431 = vld [vmem:[#allocation4 + $0x240] sm:$0xff]
    %v432 = vld [vmem:[#allocation4 + $0x248] sm:$0xff]
    %v433 = vld [vmem:[#allocation4 + $0x250] sm:$0xff]
    %v434 = vld [vmem:[#allocation4 + $0x258] sm:$0xff]
    %v435 = vld [vmem:[#allocation4 + $0x260] sm:$0xff]
    %v436 = vld [vmem:[#allocation4 + $0x268] sm:$0xff]
    %v437 = vld [vmem:[#allocation4 + $0x270] sm:$0xff]
    %v438 = vld [vmem:[#allocation4 + $0x278] sm:$0xff]
    %v439 = vld [vmem:[#allocation4 + $0x280] sm:$0xff]
    %v440 = vld [vmem:[#allocation4 + $0x288] sm:$0xff]
    %v441 = vld [vmem:[#allocation4 + $0x290] sm:$0xff]
    %v442 = vld [vmem:[#allocation4 + $0x298] sm:$0xff]
    %v443 = vld [vmem:[#allocation4 + $0x2a0] sm:$0xff]
    %v444 = vld [vmem:[#allocation4 + $0x2a8] sm:$0xff]
    %v445 = vld [vmem:[#allocation4 + $0x2b0] sm:$0xff]
    %v446 = vld [vmem:[#allocation4 + $0x2b8] sm:$0xff]
    %v447 = vld [vmem:[#allocation4 + $0x2c0] sm:$0xff]
    %v448 = vld [vmem:[#allocation4 + $0x2c8] sm:$0xff]
    %v449 = vld [vmem:[#allocation4 + $0x2d0] sm:$0xff]
    %v450 = vld [vmem:[#allocation4 + $0x2d8] sm:$0xff]
    %v451 = vld [vmem:[#allocation4 + $0x2e0] sm:$0xff]
    %v452 = vld [vmem:[#allocation4 + $0x2e8] sm:$0xff]
    %v453 = vld [vmem:[#allocation4 + $0x2f0] sm:$0xff]
    %v454 = vld [vmem:[#allocation4 + $0x2f8] sm:$0xff]
    %v455 = vld [vmem:[#allocation4 + $0x300] sm:$0xff]
    %v456 = vld [vmem:[#allocation4 + $0x308] sm:$0xff]
    %v457 = vld [vmem:[#allocation4 + $0x310] sm:$0xff]
    %v458 = vld [vmem:[#allocation4 + $0x318] sm:$0xff]
    %v459 = vld [vmem:[#allocation4 + $0x320] sm:$0xff]
    %v460 = vld [vmem:[#allocation4 + $0x328] sm:$0xff]
    %v461 = vld [vmem:[#allocation4 + $0x330] sm:$0xff]
    %v462 = vld [vmem:[#allocation4 + $0x338] sm:$0xff]
    %v463 = vld [vmem:[#allocation4 + $0x340] sm:$0xff]
    %v464 = vld [vmem:[#allocation4 + $0x348] sm:$0xff]
    %v465 = vld [vmem:[#allocation4 + $0x350] sm:$0xff]
    %v466 = vld [vmem:[#allocation4 + $0x358] sm:$0xff]
    %v467 = vld [vmem:[#allocation4 + $0x360] sm:$0xff]
    %v468 = vld [vmem:[#allocation4 + $0x368] sm:$0xff]
    %v469 = vld [vmem:[#allocation4 + $0x370] sm:$0xff]
    %v470 = vld [vmem:[#allocation4 + $0x378] sm:$0xff]
    %v471 = vld [vmem:[#allocation4 + $0x380] sm:$0xff]
    %v472 = vld [vmem:[#allocation4 + $0x388] sm:$0xff]
    %v473 = vld [vmem:[#allocation4 + $0x390] sm:$0xff]
    %v474 = vld [vmem:[#allocation4 + $0x398] sm:$0xff]
    %v475 = vld [vmem:[#allocation4 + $0x3a0] sm:$0xff]
    %v476 = vld [vmem:[#allocation4 + $0x3a8] sm:$0xff]
    %v477 = vld [vmem:[#allocation4 + $0x3b0] sm:$0xff]
    %v478 = vld [vmem:[#allocation4 + $0x3b8] sm:$0xff]
    %v479 = vld [vmem:[#allocation4 + $0x3c0] sm:$0xff]
    %v480 = vld [vmem:[#allocation4 + $0x3c8] sm:$0xff]
    %v481 = vld [vmem:[#allocation4 + $0x3d0] sm:$0xff]
    %v482 = vld [vmem:[#allocation4 + $0x3d8] sm:$0xff]
    %v483 = vld [vmem:[#allocation4 + $0x3e0] sm:$0xff]
    %v484 = vld [vmem:[#allocation4 + $0x3e8] sm:$0xff]
    %v485 = vld [vmem:[#allocation4 + $0x3f0] sm:$0xff]
    %v486 = vld [vmem:[#allocation4 + $0x3f8] sm:$0xff]
    %v487 = vld [vmem:[#allocation4 + $0x400] sm:$0xff]
    %v488 = vld [vmem:[#allocation4 + $0x408] sm:$0xff]
    %v489 = vld [vmem:[#allocation4 + $0x410] sm:$0xff]
    %v490 = vld [vmem:[#allocation4 + $0x418] sm:$0xff]
    %v491 = vld [vmem:[#allocation4 + $0x420] sm:$0xff]
    %v492 = vld [vmem:[#allocation4 + $0x428] sm:$0xff]
    %v493 = vld [vmem:[#allocation4 + $0x430] sm:$0xff]
    %v494 = vld [vmem:[#allocation4 + $0x438] sm:$0xff]
    %v495 = vld [vmem:[#allocation4 + $0x440] sm:$0xff]
    %v496 = vld [vmem:[#allocation4 + $0x448] sm:$0xff]
    %v497 = vld [vmem:[#allocation4 + $0x450] sm:$0xff]
    %v498 = vld [vmem:[#allocation4 + $0x458] sm:$0xff]
    %v499 = vld [vmem:[#allocation4 + $0x460] sm:$0xff]
    %v500 = vld [vmem:[#allocation4 + $0x468] sm:$0xff]
    %v501 = vld [vmem:[#allocation4 + $0x470] sm:$0xff]
    %v502 = vld [vmem:[#allocation4 + $0x478] sm:$0xff]
    %v503 = vld [vmem:[#allocation4 + $0x480] sm:$0xff]
    %v504 = vld [vmem:[#allocation4 + $0x488] sm:$0xff]
    %v505 = vld [vmem:[#allocation4 + $0x490] sm:$0xff]
    %v506 = vld [vmem:[#allocation4 + $0x498] sm:$0xff]
    %v507 = vld [vmem:[#allocation4 + $0x4a0] sm:$0xff]
    %v508 = vld [vmem:[#allocation4 + $0x4a8] sm:$0xff]
    %v509 = vld [vmem:[#allocation4 + $0x4b0] sm:$0xff]
    %v510 = vld [vmem:[#allocation4 + $0x4b8] sm:$0xff]
    %v511 = vld [vmem:[#allocation4 + $0x4c0] sm:$0xff]
    %v512 = vld [vmem:[#allocation4 + $0x4c8] sm:$0xff]
    %v513 = vld [vmem:[#allocation4 + $0x4d0] sm:$0xff]
    %v514 = vld [vmem:[#allocation4 + $0x4d8] sm:$0xff]
    %v515 = vld [vmem:[#allocation4 + $0x4e0] sm:$0xff]
    %v516 = vld [vmem:[#allocation4 + $0x4e8] sm:$0xff]
    %v517 = vld [vmem:[#allocation4 + $0x4f0] sm:$0xff]
    %v518 = vld [vmem:[#allocation4 + $0x4f8] sm:$0xff]
    %v519 = vld [vmem:[#allocation4 + $0x500] sm:$0xff]
    %v520 = vld [vmem:[#allocation4 + $0x508] sm:$0xff]
    %v521 = vld [vmem:[#allocation4 + $0x510] sm:$0xff]
    %v522 = vld [vmem:[#allocation4 + $0x518] sm:$0xff]
    %v523 = vld [vmem:[#allocation4 + $0x520] sm:$0xff]
    %v524 = vld [vmem:[#allocation4 + $0x528] sm:$0xff]
    %v525 = vld [vmem:[#allocation4 + $0x530] sm:$0xff]
    %v526 = vld [vmem:[#allocation4 + $0x538] sm:$0xff]
    %v527 = vld [vmem:[#allocation4 + $0x540] sm:$0xff]
    %v528 = vld [vmem:[#allocation4 + $0x548] sm:$0xff]
    %v529 = vld [vmem:[#allocation4 + $0x550] sm:$0xff]
    %v530 = vld [vmem:[#allocation4 + $0x558] sm:$0xff]
    %v531 = vld [vmem:[#allocation4 + $0x560] sm:$0xff]
    %v532 = vld [vmem:[#allocation4 + $0x568] sm:$0xff]
    %v533 = vld [vmem:[#allocation4 + $0x570] sm:$0xff]
    %v534 = vld [vmem:[#allocation4 + $0x578] sm:$0xff]
    %v535 = vld [vmem:[#allocation4 + $0x580] sm:$0xff]
    %v536 = vld [vmem:[#allocation4 + $0x588] sm:$0xff]
    %v537 = vld [vmem:[#allocation4 + $0x590] sm:$0xff]
    %v538 = vld [vmem:[#allocation4 + $0x598] sm:$0xff]
    %v539 = vld [vmem:[#allocation4 + $0x5a0] sm:$0xff]
    %v540 = vld [vmem:[#allocation4 + $0x5a8] sm:$0xff]
    %v541 = vld [vmem:[#allocation4 + $0x5b0] sm:$0xff]
    %v542 = vld [vmem:[#allocation4 + $0x5b8] sm:$0xff]
    %v543 = vld [vmem:[#allocation4 + $0x5c0] sm:$0xff]
    %v544 = vld [vmem:[#allocation4 + $0x5c8] sm:$0xff]
    %v545 = vld [vmem:[#allocation4 + $0x5d0] sm:$0xff]
    %v546 = vld [vmem:[#allocation4 + $0x5d8] sm:$0xff]
    %v547 = vld [vmem:[#allocation4 + $0x5e0] sm:$0xff]
    %v548 = vld [vmem:[#allocation4 + $0x5e8] sm:$0xff]
    %v549 = vld [vmem:[#allocation4 + $0x5f0] sm:$0xff]
    %v550 = vld [vmem:[#allocation4 + $0x5f8] sm:$0xff]
    %v551 = vld [vmem:[#allocation4 + $0x600] sm:$0xff]
    %v552 = vld [vmem:[#allocation4 + $0x608] sm:$0xff]
    %v553 = vld [vmem:[#allocation4 + $0x610] sm:$0xff]
    %v554 = vld [vmem:[#allocation4 + $0x618] sm:$0xff]
    %v555 = vld [vmem:[#allocation4 + $0x620] sm:$0xff]
    %v556 = vld [vmem:[#allocation4 + $0x628] sm:$0xff]
    %v557 = vld [vmem:[#allocation4 + $0x630] sm:$0xff]
    %v558 = vld [vmem:[#allocation4 + $0x638] sm:$0xff]
    %v559 = vld [vmem:[#allocation4 + $0x640] sm:$0xff]
    %v560 = vld [vmem:[#allocation4 + $0x648] sm:$0xff]
    %v561 = vld [vmem:[#allocation4 + $0x650] sm:$0xff]
    %v562 = vld [vmem:[#allocation4 + $0x658] sm:$0xff]
    %v563 = vld [vmem:[#allocation4 + $0x660] sm:$0xff]
    %v564 = vld [vmem:[#allocation4 + $0x668] sm:$0xff]
    %v565 = vld [vmem:[#allocation4 + $0x670] sm:$0xff]
    %v566 = vld [vmem:[#allocation4 + $0x678] sm:$0xff]
    %v567 = vld [vmem:[#allocation4 + $0x680] sm:$0xff]
    %v568 = vld [vmem:[#allocation4 + $0x688] sm:$0xff]
    %v569 = vld [vmem:[#allocation4 + $0x690] sm:$0xff]
    %v570 = vld [vmem:[#allocation4 + $0x698] sm:$0xff]
    %v571 = vld [vmem:[#allocation4 + $0x6a0] sm:$0xff]
    %v572 = vld [vmem:[#allocation4 + $0x6a8] sm:$0xff]
    %v573 = vld [vmem:[#allocation4 + $0x6b0] sm:$0xff]
    %v574 = vld [vmem:[#allocation4 + $0x6b8] sm:$0xff]
    %v575 = vld [vmem:[#allocation4 + $0x6c0] sm:$0xff]
    %v576 = vld [vmem:[#allocation4 + $0x6c8] sm:$0xff]
    %v577 = vld [vmem:[#allocation4 + $0x6d0] sm:$0xff]
    %v578 = vld [vmem:[#allocation4 + $0x6d8] sm:$0xff]
    %v579 = vld [vmem:[#allocation4 + $0x6e0] sm:$0xff]
    %v580 = vld [vmem:[#allocation4 + $0x6e8] sm:$0xff]
    %v581 = vld [vmem:[#allocation4 + $0x6f0] sm:$0xff]
    %v582 = vld [vmem:[#allocation4 + $0x6f8] sm:$0xff]
    %v583 = vld [vmem:[#allocation4 + $0x700] sm:$0xff]
    %v584 = vld [vmem:[#allocation4 + $0x708] sm:$0xff]
    %v585 = vld [vmem:[#allocation4 + $0x710] sm:$0xff]
    %v586 = vld [vmem:[#allocation4 + $0x718] sm:$0xff]
    %v587 = vld [vmem:[#allocation4 + $0x720] sm:$0xff]
    %v588 = vld [vmem:[#allocation4 + $0x728] sm:$0xff]
    %v589 = vld [vmem:[#allocation4 + $0x730] sm:$0xff]
    %v590 = vld [vmem:[#allocation4 + $0x738] sm:$0xff]
    %v591 = vld [vmem:[#allocation4 + $0x740] sm:$0xff]
    %v592 = vld [vmem:[#allocation4 + $0x748] sm:$0xff]
    %v593 = vld [vmem:[#allocation4 + $0x750] sm:$0xff]
    %v594 = vld [vmem:[#allocation4 + $0x758] sm:$0xff]
    %v595 = vld [vmem:[#allocation4 + $0x760] sm:$0xff]
    %v596 = vld [vmem:[#allocation4 + $0x768] sm:$0xff]
    %v597 = vld [vmem:[#allocation4 + $0x770] sm:$0xff]
    %v598 = vld [vmem:[#allocation4 + $0x778] sm:$0xff]
    %v599 = vld [vmem:[#allocation4 + $0x780] sm:$0xff]
    %v600 = vld [vmem:[#allocation4 + $0x788] sm:$0xff]
    %v601 = vld [vmem:[#allocation4 + $0x790] sm:$0xff]
    %v602 = vld [vmem:[#allocation4 + $0x798] sm:$0xff]
    %v603 = vld [vmem:[#allocation4 + $0x7a0] sm:$0xff]
    %v604 = vld [vmem:[#allocation4 + $0x7a8] sm:$0xff]
    %v605 = vld [vmem:[#allocation4 + $0x7b0] sm:$0xff]
    %v606 = vld [vmem:[#allocation4 + $0x7b8] sm:$0xff]
    %v607 = vld [vmem:[#allocation4 + $0x7c0] sm:$0xff]
    %v608 = vld [vmem:[#allocation4 + $0x7c8] sm:$0xff]
    %v609 = vld [vmem:[#allocation4 + $0x7d0] sm:$0xff]
    %v610 = vld [vmem:[#allocation4 + $0x7d8] sm:$0xff]
    %v611 = vld [vmem:[#allocation4 + $0x7e0] sm:$0xff]
    %v612 = vld [vmem:[#allocation4 + $0x7e8] sm:$0xff]
    %v613 = vld [vmem:[#allocation4 + $0x7f0] sm:$0xff]
    %v614 = vld [vmem:[#allocation4 + $0x7f8] sm:$0xff]
    %v616 = vperm.slane %v71, 0
    %v617 = vperm.slane %v71, 1
    %v618 = vperm.slane %v71, 2
    %v619 = vperm.slane %v71, 3
    %v880 = vunpack.c.l.b16 %v359
    %v881 = vunpack.c.h.b16 %v359
    %v882 = vunpack.c.l.b16 %v360
    %v883 = vunpack.c.h.b16 %v360
    %v884 = vunpack.c.l.b16 %v361
    %v885 = vunpack.c.h.b16 %v361
    %v886 = vunpack.c.l.b16 %v362
    %v887 = vunpack.c.h.b16 %v362
    %v888 = vunpack.c.l.b16 %v363
    %v889 = vunpack.c.h.b16 %v363
    %v890 = vunpack.c.l.b16 %v364
    %v891 = vunpack.c.h.b16 %v364
    %v892 = vunpack.c.l.b16 %v365
    %v893 = vunpack.c.h.b16 %v365
    %v894 = vunpack.c.l.b16 %v366
    %v895 = vunpack.c.h.b16 %v366
    %v896 = vunpack.c.l.b16 %v367
    %v897 = vunpack.c.h.b16 %v367
    %v898 = vunpack.c.l.b16 %v368
    %v899 = vunpack.c.h.b16 %v368
    %v900 = vunpack.c.l.b16 %v369
    %v901 = vunpack.c.h.b16 %v369
    %v902 = vunpack.c.l.b16 %v370
    %v903 = vunpack.c.h.b16 %v370
    %v904 = vunpack.c.l.b16 %v371
    %v905 = vunpack.c.h.b16 %v371
    %v906 = vunpack.c.l.b16 %v372
    %v907 = vunpack.c.h.b16 %v372
    %v908 = vunpack.c.l.b16 %v373
    %v909 = vunpack.c.h.b16 %v373
    %v910 = vunpack.c.l.b16 %v374
    %v911 = vunpack.c.h.b16 %v374
    %v912 = vunpack.c.l.b16 %v375
    %v913 = vunpack.c.h.b16 %v375
    %v914 = vunpack.c.l.b16 %v376
    %v915 = vunpack.c.h.b16 %v376
    %v916 = vunpack.c.l.b16 %v377
    %v917 = vunpack.c.h.b16 %v377
    %v918 = vunpack.c.l.b16 %v378
    %v919 = vunpack.c.h.b16 %v378
    %v920 = vunpack.c.l.b16 %v379
    %v921 = vunpack.c.h.b16 %v379
    %v922 = vunpack.c.l.b16 %v380
    %v923 = vunpack.c.h.b16 %v380
    %v924 = vunpack.c.l.b16 %v381
    %v925 = vunpack.c.h.b16 %v381
    %v926 = vunpack.c.l.b16 %v382
    %v927 = vunpack.c.h.b16 %v382
    %v928 = vunpack.c.l.b16 %v383
    %v929 = vunpack.c.h.b16 %v383
    %v930 = vunpack.c.l.b16 %v384
    %v931 = vunpack.c.h.b16 %v384
    %v932 = vunpack.c.l.b16 %v385
    %v933 = vunpack.c.h.b16 %v385
    %v934 = vunpack.c.l.b16 %v386
    %v935 = vunpack.c.h.b16 %v386
    %v936 = vunpack.c.l.b16 %v387
    %v937 = vunpack.c.h.b16 %v387
    %v938 = vunpack.c.l.b16 %v388
    %v939 = vunpack.c.h.b16 %v388
    %v940 = vunpack.c.l.b16 %v389
    %v941 = vunpack.c.h.b16 %v389
    %v942 = vunpack.c.l.b16 %v390
    %v943 = vunpack.c.h.b16 %v390
    %v944 = vunpack.c.l.b16 %v391
    %v945 = vunpack.c.h.b16 %v391
    %v946 = vunpack.c.l.b16 %v392
    %v947 = vunpack.c.h.b16 %v392
    %v948 = vunpack.c.l.b16 %v393
    %v949 = vunpack.c.h.b16 %v393
    %v950 = vunpack.c.l.b16 %v394
    %v951 = vunpack.c.h.b16 %v394
    %v952 = vunpack.c.l.b16 %v395
    %v953 = vunpack.c.h.b16 %v395
    %v954 = vunpack.c.l.b16 %v396
    %v955 = vunpack.c.h.b16 %v396
    %v956 = vunpack.c.l.b16 %v397
    %v957 = vunpack.c.h.b16 %v397
    %v958 = vunpack.c.l.b16 %v398
    %v959 = vunpack.c.h.b16 %v398
    %v960 = vunpack.c.l.b16 %v399
    %v961 = vunpack.c.h.b16 %v399
    %v962 = vunpack.c.l.b16 %v400
    %v963 = vunpack.c.h.b16 %v400
    %v964 = vunpack.c.l.b16 %v401
    %v965 = vunpack.c.h.b16 %v401
    %v966 = vunpack.c.l.b16 %v402
    %v967 = vunpack.c.h.b16 %v402
    %v968 = vunpack.c.l.b16 %v403
    %v969 = vunpack.c.h.b16 %v403
    %v970 = vunpack.c.l.b16 %v404
    %v971 = vunpack.c.h.b16 %v404
    %v972 = vunpack.c.l.b16 %v405
    %v973 = vunpack.c.h.b16 %v405
    %v974 = vunpack.c.l.b16 %v406
    %v975 = vunpack.c.h.b16 %v406
    %v976 = vunpack.c.l.b16 %v407
    %v977 = vunpack.c.h.b16 %v407
    %v978 = vunpack.c.l.b16 %v408
    %v979 = vunpack.c.h.b16 %v408
    %v980 = vunpack.c.l.b16 %v409
    %v981 = vunpack.c.h.b16 %v409
    %v982 = vunpack.c.l.b16 %v410
    %v983 = vunpack.c.h.b16 %v410
    %v984 = vunpack.c.l.b16 %v411
    %v985 = vunpack.c.h.b16 %v411
    %v986 = vunpack.c.l.b16 %v412
    %v987 = vunpack.c.h.b16 %v412
    %v988 = vunpack.c.l.b16 %v413
    %v989 = vunpack.c.h.b16 %v413
    %v990 = vunpack.c.l.b16 %v414
    %v991 = vunpack.c.h.b16 %v414
    %v992 = vunpack.c.l.b16 %v415
    %v993 = vunpack.c.h.b16 %v415
    %v994 = vunpack.c.l.b16 %v416
    %v995 = vunpack.c.h.b16 %v416
    %v996 = vunpack.c.l.b16 %v417
    %v997 = vunpack.c.h.b16 %v417
    %v998 = vunpack.c.l.b16 %v418
    %v999 = vunpack.c.h.b16 %v418
    %v1000 = vunpack.c.l.b16 %v419
    %v1001 = vunpack.c.h.b16 %v419
    %v1002 = vunpack.c.l.b16 %v420
    %v1003 = vunpack.c.h.b16 %v420
    %v1004 = vunpack.c.l.b16 %v421
    %v1005 = vunpack.c.h.b16 %v421
    %v1006 = vunpack.c.l.b16 %v422
    %v1007 = vunpack.c.h.b16 %v422
    %v1008 = vunpack.c.l.b16 %v423
    %v1009 = vunpack.c.h.b16 %v423
    %v1010 = vunpack.c.l.b16 %v424
    %v1011 = vunpack.c.h.b16 %v424
    %v1012 = vunpack.c.l.b16 %v425
    %v1013 = vunpack.c.h.b16 %v425
    %v1014 = vunpack.c.l.b16 %v426
    %v1015 = vunpack.c.h.b16 %v426
    %v1016 = vunpack.c.l.b16 %v427
    %v1017 = vunpack.c.h.b16 %v427
    %v1018 = vunpack.c.l.b16 %v428
    %v1019 = vunpack.c.h.b16 %v428
    %v1020 = vunpack.c.l.b16 %v429
    %v1021 = vunpack.c.h.b16 %v429
    %v1022 = vunpack.c.l.b16 %v430
    %v1023 = vunpack.c.h.b16 %v430
    %v1024 = vunpack.c.l.b16 %v431
    %v1025 = vunpack.c.h.b16 %v431
    %v1026 = vunpack.c.l.b16 %v432
    %v1027 = vunpack.c.h.b16 %v432
    %v1028 = vunpack.c.l.b16 %v433
    %v1029 = vunpack.c.h.b16 %v433
    %v1030 = vunpack.c.l.b16 %v434
    %v1031 = vunpack.c.h.b16 %v434
    %v1032 = vunpack.c.l.b16 %v435
    %v1033 = vunpack.c.h.b16 %v435
    %v1034 = vunpack.c.l.b16 %v436
    %v1035 = vunpack.c.h.b16 %v436
    %v1036 = vunpack.c.l.b16 %v437
    %v1037 = vunpack.c.h.b16 %v437
    %v1038 = vunpack.c.l.b16 %v438
    %v1039 = vunpack.c.h.b16 %v438
    %v1040 = vunpack.c.l.b16 %v439
    %v1041 = vunpack.c.h.b16 %v439
    %v1042 = vunpack.c.l.b16 %v440
    %v1043 = vunpack.c.h.b16 %v440
    %v1044 = vunpack.c.l.b16 %v441
    %v1045 = vunpack.c.h.b16 %v441
    %v1046 = vunpack.c.l.b16 %v442
    %v1047 = vunpack.c.h.b16 %v442
    %v1048 = vunpack.c.l.b16 %v443
    %v1049 = vunpack.c.h.b16 %v443
    %v1050 = vunpack.c.l.b16 %v444
    %v1051 = vunpack.c.h.b16 %v444
    %v1052 = vunpack.c.l.b16 %v445
    %v1053 = vunpack.c.h.b16 %v445
    %v1054 = vunpack.c.l.b16 %v446
    %v1055 = vunpack.c.h.b16 %v446
    %v1056 = vunpack.c.l.b16 %v447
    %v1057 = vunpack.c.h.b16 %v447
    %v1058 = vunpack.c.l.b16 %v448
    %v1059 = vunpack.c.h.b16 %v448
    %v1060 = vunpack.c.l.b16 %v449
    %v1061 = vunpack.c.h.b16 %v449
    %v1062 = vunpack.c.l.b16 %v450
    %v1063 = vunpack.c.h.b16 %v450
    %v1064 = vunpack.c.l.b16 %v451
    %v1065 = vunpack.c.h.b16 %v451
    %v1066 = vunpack.c.l.b16 %v452
    %v1067 = vunpack.c.h.b16 %v452
    %v1068 = vunpack.c.l.b16 %v453
    %v1069 = vunpack.c.h.b16 %v453
    %v1070 = vunpack.c.l.b16 %v454
    %v1071 = vunpack.c.h.b16 %v454
    %v1072 = vunpack.c.l.b16 %v455
    %v1073 = vunpack.c.h.b16 %v455
    %v1074 = vunpack.c.l.b16 %v456
    %v1075 = vunpack.c.h.b16 %v456
    %v1076 = vunpack.c.l.b16 %v457
    %v1077 = vunpack.c.h.b16 %v457
    %v1078 = vunpack.c.l.b16 %v458
    %v1079 = vunpack.c.h.b16 %v458
    %v1080 = vunpack.c.l.b16 %v459
    %v1081 = vunpack.c.h.b16 %v459
    %v1082 = vunpack.c.l.b16 %v460
    %v1083 = vunpack.c.h.b16 %v460
    %v1084 = vunpack.c.l.b16 %v461
    %v1085 = vunpack.c.h.b16 %v461
    %v1086 = vunpack.c.l.b16 %v462
    %v1087 = vunpack.c.h.b16 %v462
    %v1088 = vunpack.c.l.b16 %v463
    %v1089 = vunpack.c.h.b16 %v463
    %v1090 = vunpack.c.l.b16 %v464
    %v1091 = vunpack.c.h.b16 %v464
    %v1092 = vunpack.c.l.b16 %v465
    %v1093 = vunpack.c.h.b16 %v465
    %v1094 = vunpack.c.l.b16 %v466
    %v1095 = vunpack.c.h.b16 %v466
    %v1096 = vunpack.c.l.b16 %v467
    %v1097 = vunpack.c.h.b16 %v467
    %v1098 = vunpack.c.l.b16 %v468
    %v1099 = vunpack.c.h.b16 %v468
    %v1100 = vunpack.c.l.b16 %v469
    %v1101 = vunpack.c.h.b16 %v469
    %v1102 = vunpack.c.l.b16 %v470
    %v1103 = vunpack.c.h.b16 %v470
    %v1104 = vunpack.c.l.b16 %v471
    %v1105 = vunpack.c.h.b16 %v471
    %v1106 = vunpack.c.l.b16 %v472
    %v1107 = vunpack.c.h.b16 %v472
    %v1108 = vunpack.c.l.b16 %v473
    %v1109 = vunpack.c.h.b16 %v473
    %v1110 = vunpack.c.l.b16 %v474
    %v1111 = vunpack.c.h.b16 %v474
    %v1112 = vunpack.c.l.b16 %v475
    %v1113 = vunpack.c.h.b16 %v475
    %v1114 = vunpack.c.l.b16 %v476
    %v1115 = vunpack.c.h.b16 %v476
    %v1116 = vunpack.c.l.b16 %v477
    %v1117 = vunpack.c.h.b16 %v477
    %v1118 = vunpack.c.l.b16 %v478
    %v1119 = vunpack.c.h.b16 %v478
    %v1120 = vunpack.c.l.b16 %v479
    %v1121 = vunpack.c.h.b16 %v479
    %v1122 = vunpack.c.l.b16 %v480
    %v1123 = vunpack.c.h.b16 %v480
    %v1124 = vunpack.c.l.b16 %v481
    %v1125 = vunpack.c.h.b16 %v481
    %v1126 = vunpack.c.l.b16 %v482
    %v1127 = vunpack.c.h.b16 %v482
    %v1128 = vunpack.c.l.b16 %v483
    %v1129 = vunpack.c.h.b16 %v483
    %v1130 = vunpack.c.l.b16 %v484
    %v1131 = vunpack.c.h.b16 %v484
    %v1132 = vunpack.c.l.b16 %v485
    %v1133 = vunpack.c.h.b16 %v485
    %v1134 = vunpack.c.l.b16 %v486
    %v1135 = vunpack.c.h.b16 %v486
    %v1136 = vunpack.c.l.b16 %v487
    %v1137 = vunpack.c.h.b16 %v487
    %v1138 = vunpack.c.l.b16 %v488
    %v1139 = vunpack.c.h.b16 %v488
    %v1140 = vunpack.c.l.b16 %v489
    %v1141 = vunpack.c.h.b16 %v489
    %v1142 = vunpack.c.l.b16 %v490
    %v1143 = vunpack.c.h.b16 %v490
    %v1144 = vunpack.c.l.b16 %v491
    %v1145 = vunpack.c.h.b16 %v491
    %v1146 = vunpack.c.l.b16 %v492
    %v1147 = vunpack.c.h.b16 %v492
    %v1148 = vunpack.c.l.b16 %v493
    %v1149 = vunpack.c.h.b16 %v493
    %v1150 = vunpack.c.l.b16 %v494
    %v1151 = vunpack.c.h.b16 %v494
    %v1152 = vunpack.c.l.b16 %v495
    %v1153 = vunpack.c.h.b16 %v495
    %v1154 = vunpack.c.l.b16 %v496
    %v1155 = vunpack.c.h.b16 %v496
    %v1156 = vunpack.c.l.b16 %v497
    %v1157 = vunpack.c.h.b16 %v497
    %v1158 = vunpack.c.l.b16 %v498
    %v1159 = vunpack.c.h.b16 %v498
    %v1160 = vunpack.c.l.b16 %v499
    %v1161 = vunpack.c.h.b16 %v499
    %v1162 = vunpack.c.l.b16 %v500
    %v1163 = vunpack.c.h.b16 %v500
    %v1164 = vunpack.c.l.b16 %v501
    %v1165 = vunpack.c.h.b16 %v501
    %v1166 = vunpack.c.l.b16 %v502
    %v1167 = vunpack.c.h.b16 %v502
    %v1168 = vunpack.c.l.b16 %v503
    %v1169 = vunpack.c.h.b16 %v503
    %v1170 = vunpack.c.l.b16 %v504
    %v1171 = vunpack.c.h.b16 %v504
    %v1172 = vunpack.c.l.b16 %v505
    %v1173 = vunpack.c.h.b16 %v505
    %v1174 = vunpack.c.l.b16 %v506
    %v1175 = vunpack.c.h.b16 %v506
    %v1176 = vunpack.c.l.b16 %v507
    %v1177 = vunpack.c.h.b16 %v507
    %v1178 = vunpack.c.l.b16 %v508
    %v1179 = vunpack.c.h.b16 %v508
    %v1180 = vunpack.c.l.b16 %v509
    %v1181 = vunpack.c.h.b16 %v509
    %v1182 = vunpack.c.l.b16 %v510
    %v1183 = vunpack.c.h.b16 %v510
    %v1184 = vunpack.c.l.b16 %v511
    %v1185 = vunpack.c.h.b16 %v511
    %v1186 = vunpack.c.l.b16 %v512
    %v1187 = vunpack.c.h.b16 %v512
    %v1188 = vunpack.c.l.b16 %v513
    %v1189 = vunpack.c.h.b16 %v513
    %v1190 = vunpack.c.l.b16 %v514
    %v1191 = vunpack.c.h.b16 %v514
    %v1192 = vunpack.c.l.b16 %v515
    %v1193 = vunpack.c.h.b16 %v515
    %v1194 = vunpack.c.l.b16 %v516
    %v1195 = vunpack.c.h.b16 %v516
    %v1196 = vunpack.c.l.b16 %v517
    %v1197 = vunpack.c.h.b16 %v517
    %v1198 = vunpack.c.l.b16 %v518
    %v1199 = vunpack.c.h.b16 %v518
    %v1200 = vunpack.c.l.b16 %v519
    %v1201 = vunpack.c.h.b16 %v519
    %v1202 = vunpack.c.l.b16 %v520
    %v1203 = vunpack.c.h.b16 %v520
    %v1204 = vunpack.c.l.b16 %v521
    %v1205 = vunpack.c.h.b16 %v521
    %v1206 = vunpack.c.l.b16 %v522
    %v1207 = vunpack.c.h.b16 %v522
    %v1208 = vunpack.c.l.b16 %v523
    %v1209 = vunpack.c.h.b16 %v523
    %v1210 = vunpack.c.l.b16 %v524
    %v1211 = vunpack.c.h.b16 %v524
    %v1212 = vunpack.c.l.b16 %v525
    %v1213 = vunpack.c.h.b16 %v525
    %v1214 = vunpack.c.l.b16 %v526
    %v1215 = vunpack.c.h.b16 %v526
    %v1216 = vunpack.c.l.b16 %v527
    %v1217 = vunpack.c.h.b16 %v527
    %v1218 = vunpack.c.l.b16 %v528
    %v1219 = vunpack.c.h.b16 %v528
    %v1220 = vunpack.c.l.b16 %v529
    %v1221 = vunpack.c.h.b16 %v529
    %v1222 = vunpack.c.l.b16 %v530
    %v1223 = vunpack.c.h.b16 %v530
    %v1224 = vunpack.c.l.b16 %v531
    %v1225 = vunpack.c.h.b16 %v531
    %v1226 = vunpack.c.l.b16 %v532
    %v1227 = vunpack.c.h.b16 %v532
    %v1228 = vunpack.c.l.b16 %v533
    %v1229 = vunpack.c.h.b16 %v533
    %v1230 = vunpack.c.l.b16 %v534
    %v1231 = vunpack.c.h.b16 %v534
    %v1232 = vunpack.c.l.b16 %v535
    %v1233 = vunpack.c.h.b16 %v535
    %v1234 = vunpack.c.l.b16 %v536
    %v1235 = vunpack.c.h.b16 %v536
    %v1236 = vunpack.c.l.b16 %v537
    %v1237 = vunpack.c.h.b16 %v537
    %v1238 = vunpack.c.l.b16 %v538
    %v1239 = vunpack.c.h.b16 %v538
    %v1240 = vunpack.c.l.b16 %v539
    %v1241 = vunpack.c.h.b16 %v539
    %v1242 = vunpack.c.l.b16 %v540
    %v1243 = vunpack.c.h.b16 %v540
    %v1244 = vunpack.c.l.b16 %v541
    %v1245 = vunpack.c.h.b16 %v541
    %v1246 = vunpack.c.l.b16 %v542
    %v1247 = vunpack.c.h.b16 %v542
    %v1248 = vunpack.c.l.b16 %v543
    %v1249 = vunpack.c.h.b16 %v543
    %v1250 = vunpack.c.l.b16 %v544
    %v1251 = vunpack.c.h.b16 %v544
    %v1252 = vunpack.c.l.b16 %v545
    %v1253 = vunpack.c.h.b16 %v545
    %v1254 = vunpack.c.l.b16 %v546
    %v1255 = vunpack.c.h.b16 %v546
    %v1256 = vunpack.c.l.b16 %v547
    %v1257 = vunpack.c.h.b16 %v547
    %v1258 = vunpack.c.l.b16 %v548
    %v1259 = vunpack.c.h.b16 %v548
    %v1260 = vunpack.c.l.b16 %v549
    %v1261 = vunpack.c.h.b16 %v549
    %v1262 = vunpack.c.l.b16 %v550
    %v1263 = vunpack.c.h.b16 %v550
    %v1264 = vunpack.c.l.b16 %v551
    %v1265 = vunpack.c.h.b16 %v551
    %v1266 = vunpack.c.l.b16 %v552
    %v1267 = vunpack.c.h.b16 %v552
    %v1268 = vunpack.c.l.b16 %v553
    %v1269 = vunpack.c.h.b16 %v553
    %v1270 = vunpack.c.l.b16 %v554
    %v1271 = vunpack.c.h.b16 %v554
    %v1272 = vunpack.c.l.b16 %v555
    %v1273 = vunpack.c.h.b16 %v555
    %v1274 = vunpack.c.l.b16 %v556
    %v1275 = vunpack.c.h.b16 %v556
    %v1276 = vunpack.c.l.b16 %v557
    %v1277 = vunpack.c.h.b16 %v557
    %v1278 = vunpack.c.l.b16 %v558
    %v1279 = vunpack.c.h.b16 %v558
    %v1280 = vunpack.c.l.b16 %v559
    %v1281 = vunpack.c.h.b16 %v559
    %v1282 = vunpack.c.l.b16 %v560
    %v1283 = vunpack.c.h.b16 %v560
    %v1284 = vunpack.c.l.b16 %v561
    %v1285 = vunpack.c.h.b16 %v561
    %v1286 = vunpack.c.l.b16 %v562
    %v1287 = vunpack.c.h.b16 %v562
    %v1288 = vunpack.c.l.b16 %v563
    %v1289 = vunpack.c.h.b16 %v563
    %v1290 = vunpack.c.l.b16 %v564
    %v1291 = vunpack.c.h.b16 %v564
    %v1292 = vunpack.c.l.b16 %v565
    %v1293 = vunpack.c.h.b16 %v565
    %v1294 = vunpack.c.l.b16 %v566
    %v1295 = vunpack.c.h.b16 %v566
    %v1296 = vunpack.c.l.b16 %v567
    %v1297 = vunpack.c.h.b16 %v567
    %v1298 = vunpack.c.l.b16 %v568
    %v1299 = vunpack.c.h.b16 %v568
    %v1300 = vunpack.c.l.b16 %v569
    %v1301 = vunpack.c.h.b16 %v569
    %v1302 = vunpack.c.l.b16 %v570
    %v1303 = vunpack.c.h.b16 %v570
    %v1304 = vunpack.c.l.b16 %v571
    %v1305 = vunpack.c.h.b16 %v571
    %v1306 = vunpack.c.l.b16 %v572
    %v1307 = vunpack.c.h.b16 %v572
    %v1308 = vunpack.c.l.b16 %v573
    %v1309 = vunpack.c.h.b16 %v573
    %v1310 = vunpack.c.l.b16 %v574
    %v1311 = vunpack.c.h.b16 %v574
    %v1312 = vunpack.c.l.b16 %v575
    %v1313 = vunpack.c.h.b16 %v575
    %v1314 = vunpack.c.l.b16 %v576
    %v1315 = vunpack.c.h.b16 %v576
    %v1316 = vunpack.c.l.b16 %v577
    %v1317 = vunpack.c.h.b16 %v577
    %v1318 = vunpack.c.l.b16 %v578
    %v1319 = vunpack.c.h.b16 %v578
    %v1320 = vunpack.c.l.b16 %v579
    %v1321 = vunpack.c.h.b16 %v579
    %v1322 = vunpack.c.l.b16 %v580
    %v1323 = vunpack.c.h.b16 %v580
    %v1324 = vunpack.c.l.b16 %v581
    %v1325 = vunpack.c.h.b16 %v581
    %v1326 = vunpack.c.l.b16 %v582
    %v1327 = vunpack.c.h.b16 %v582
    %v1328 = vunpack.c.l.b16 %v583
    %v1329 = vunpack.c.h.b16 %v583
    %v1330 = vunpack.c.l.b16 %v584
    %v1331 = vunpack.c.h.b16 %v584
    %v1332 = vunpack.c.l.b16 %v585
    %v1333 = vunpack.c.h.b16 %v585
    %v1334 = vunpack.c.l.b16 %v586
    %v1335 = vunpack.c.h.b16 %v586
    %v1336 = vunpack.c.l.b16 %v587
    %v1337 = vunpack.c.h.b16 %v587
    %v1338 = vunpack.c.l.b16 %v588
    %v1339 = vunpack.c.h.b16 %v588
    %v1340 = vunpack.c.l.b16 %v589
    %v1341 = vunpack.c.h.b16 %v589
    %v1342 = vunpack.c.l.b16 %v590
    %v1343 = vunpack.c.h.b16 %v590
    %v1344 = vunpack.c.l.b16 %v591
    %v1345 = vunpack.c.h.b16 %v591
    %v1346 = vunpack.c.l.b16 %v592
    %v1347 = vunpack.c.h.b16 %v592
    %v1348 = vunpack.c.l.b16 %v593
    %v1349 = vunpack.c.h.b16 %v593
    %v1350 = vunpack.c.l.b16 %v594
    %v1351 = vunpack.c.h.b16 %v594
    %v1352 = vunpack.c.l.b16 %v595
    %v1353 = vunpack.c.h.b16 %v595
    %v1354 = vunpack.c.l.b16 %v596
    %v1355 = vunpack.c.h.b16 %v596
    %v1356 = vunpack.c.l.b16 %v597
    %v1357 = vunpack.c.h.b16 %v597
    %v1358 = vunpack.c.l.b16 %v598
    %v1359 = vunpack.c.h.b16 %v598
    %v1360 = vunpack.c.l.b16 %v599
    %v1361 = vunpack.c.h.b16 %v599
    %v1362 = vunpack.c.l.b16 %v600
    %v1363 = vunpack.c.h.b16 %v600
    %v1364 = vunpack.c.l.b16 %v601
    %v1365 = vunpack.c.h.b16 %v601
    %v1366 = vunpack.c.l.b16 %v602
    %v1367 = vunpack.c.h.b16 %v602
    %v1368 = vunpack.c.l.b16 %v603
    %v1369 = vunpack.c.h.b16 %v603
    %v1370 = vunpack.c.l.b16 %v604
    %v1371 = vunpack.c.h.b16 %v604
    %v1372 = vunpack.c.l.b16 %v605
    %v1373 = vunpack.c.h.b16 %v605
    %v1374 = vunpack.c.l.b16 %v606
    %v1375 = vunpack.c.h.b16 %v606
    %v1376 = vunpack.c.l.b16 %v607
    %v1377 = vunpack.c.h.b16 %v607
    %v1378 = vunpack.c.l.b16 %v608
    %v1379 = vunpack.c.h.b16 %v608
    %v1380 = vunpack.c.l.b16 %v609
    %v1381 = vunpack.c.h.b16 %v609
    %v1382 = vunpack.c.l.b16 %v610
    %v1383 = vunpack.c.h.b16 %v610
    %v1384 = vunpack.c.l.b16 %v611
    %v1385 = vunpack.c.h.b16 %v611
    %v1386 = vunpack.c.l.b16 %v612
    %v1387 = vunpack.c.h.b16 %v612
    %v1388 = vunpack.c.l.b16 %v613
    %v1389 = vunpack.c.h.b16 %v613
    %v1390 = vunpack.c.l.b16 %v614
    %v1391 = vunpack.c.h.b16 %v614
    %v1392 = vpack.c.b16 %v884, %v880
    %v1393 = vpack.c.b16 %v885, %v881
    %v1394 = vpack.c.b16 %v886, %v882
    %v1395 = vpack.c.b16 %v887, %v883
    %v1396 = vpack.c.b16 %v892, %v888
    %v1397 = vpack.c.b16 %v893, %v889
    %v1398 = vpack.c.b16 %v894, %v890
    %v1399 = vpack.c.b16 %v895, %v891
    %v1400 = vpack.c.b16 %v900, %v896
    %v1401 = vpack.c.b16 %v901, %v897
    %v1402 = vpack.c.b16 %v902, %v898
    %v1403 = vpack.c.b16 %v903, %v899
    %v1404 = vpack.c.b16 %v908, %v904
    %v1405 = vpack.c.b16 %v909, %v905
    %v1406 = vpack.c.b16 %v910, %v906
    %v1407 = vpack.c.b16 %v911, %v907
    %v1408 = vpack.c.b16 %v916, %v912
    %v1409 = vpack.c.b16 %v917, %v913
    %v1410 = vpack.c.b16 %v918, %v914
    %v1411 = vpack.c.b16 %v919, %v915
    %v1412 = vpack.c.b16 %v924, %v920
    %v1413 = vpack.c.b16 %v925, %v921
    %v1414 = vpack.c.b16 %v926, %v922
    %v1415 = vpack.c.b16 %v927, %v923
    %v1416 = vpack.c.b16 %v932, %v928
    %v1417 = vpack.c.b16 %v933, %v929
    %v1418 = vpack.c.b16 %v934, %v930
    %v1419 = vpack.c.b16 %v935, %v931
    %v1420 = vpack.c.b16 %v940, %v936
    %v1421 = vpack.c.b16 %v941, %v937
    %v1422 = vpack.c.b16 %v942, %v938
    %v1423 = vpack.c.b16 %v943, %v939
    %v1424 = vpack.c.b16 %v948, %v944
    %v1425 = vpack.c.b16 %v949, %v945
    %v1426 = vpack.c.b16 %v950, %v946
    %v1427 = vpack.c.b16 %v951, %v947
    %v1428 = vpack.c.b16 %v956, %v952
    %v1429 = vpack.c.b16 %v957, %v953
    %v1430 = vpack.c.b16 %v958, %v954
    %v1431 = vpack.c.b16 %v959, %v955
    %v1432 = vpack.c.b16 %v964, %v960
    %v1433 = vpack.c.b16 %v965, %v961
    %v1434 = vpack.c.b16 %v966, %v962
    %v1435 = vpack.c.b16 %v967, %v963
    %v1436 = vpack.c.b16 %v972, %v968
    %v1437 = vpack.c.b16 %v973, %v969
    %v1438 = vpack.c.b16 %v974, %v970
    %v1439 = vpack.c.b16 %v975, %v971
    %v1440 = vpack.c.b16 %v980, %v976
    %v1441 = vpack.c.b16 %v981, %v977
    %v1442 = vpack.c.b16 %v982, %v978
    %v1443 = vpack.c.b16 %v983, %v979
    %v1444 = vpack.c.b16 %v988, %v984
    %v1445 = vpack.c.b16 %v989, %v985
    %v1446 = vpack.c.b16 %v990, %v986
    %v1447 = vpack.c.b16 %v991, %v987
    %v1448 = vpack.c.b16 %v996, %v992
    %v1449 = vpack.c.b16 %v997, %v993
    %v1450 = vpack.c.b16 %v998, %v994
    %v1451 = vpack.c.b16 %v999, %v995
    %v1452 = vpack.c.b16 %v1004, %v1000
    %v1453 = vpack.c.b16 %v1005, %v1001
    %v1454 = vpack.c.b16 %v1006, %v1002
    %v1455 = vpack.c.b16 %v1007, %v1003
    %v1456 = vpack.c.b16 %v1012, %v1008
    %v1457 = vpack.c.b16 %v1013, %v1009
    %v1458 = vpack.c.b16 %v1014, %v1010
    %v1459 = vpack.c.b16 %v1015, %v1011
    %v1460 = vpack.c.b16 %v1020, %v1016
    %v1461 = vpack.c.b16 %v1021, %v1017
    %v1462 = vpack.c.b16 %v1022, %v1018
    %v1463 = vpack.c.b16 %v1023, %v1019
    %v1464 = vpack.c.b16 %v1028, %v1024
    %v1465 = vpack.c.b16 %v1029, %v1025
    %v1466 = vpack.c.b16 %v1030, %v1026
    %v1467 = vpack.c.b16 %v1031, %v1027
    %v1468 = vpack.c.b16 %v1036, %v1032
    %v1469 = vpack.c.b16 %v1037, %v1033
    %v1470 = vpack.c.b16 %v1038, %v1034
    %v1471 = vpack.c.b16 %v1039, %v1035
    %v1472 = vpack.c.b16 %v1044, %v1040
    %v1473 = vpack.c.b16 %v1045, %v1041
    %v1474 = vpack.c.b16 %v1046, %v1042
    %v1475 = vpack.c.b16 %v1047, %v1043
    %v1476 = vpack.c.b16 %v1052, %v1048
    %v1477 = vpack.c.b16 %v1053, %v1049
    %v1478 = vpack.c.b16 %v1054, %v1050
    %v1479 = vpack.c.b16 %v1055, %v1051
    %v1480 = vpack.c.b16 %v1060, %v1056
    %v1481 = vpack.c.b16 %v1061, %v1057
    %v1482 = vpack.c.b16 %v1062, %v1058
    %v1483 = vpack.c.b16 %v1063, %v1059
    %v1484 = vpack.c.b16 %v1068, %v1064
    %v1485 = vpack.c.b16 %v1069, %v1065
    %v1486 = vpack.c.b16 %v1070, %v1066
    %v1487 = vpack.c.b16 %v1071, %v1067
    %v1488 = vpack.c.b16 %v1076, %v1072
    %v1489 = vpack.c.b16 %v1077, %v1073
    %v1490 = vpack.c.b16 %v1078, %v1074
    %v1491 = vpack.c.b16 %v1079, %v1075
    %v1492 = vpack.c.b16 %v1084, %v1080
    %v1493 = vpack.c.b16 %v1085, %v1081
    %v1494 = vpack.c.b16 %v1086, %v1082
    %v1495 = vpack.c.b16 %v1087, %v1083
    %v1496 = vpack.c.b16 %v1092, %v1088
    %v1497 = vpack.c.b16 %v1093, %v1089
    %v1498 = vpack.c.b16 %v1094, %v1090
    %v1499 = vpack.c.b16 %v1095, %v1091
    %v1500 = vpack.c.b16 %v1100, %v1096
    %v1501 = vpack.c.b16 %v1101, %v1097
    %v1502 = vpack.c.b16 %v1102, %v1098
    %v1503 = vpack.c.b16 %v1103, %v1099
    %v1504 = vpack.c.b16 %v1108, %v1104
    %v1505 = vpack.c.b16 %v1109, %v1105
    %v1506 = vpack.c.b16 %v1110, %v1106
    %v1507 = vpack.c.b16 %v1111, %v1107
    %v1508 = vpack.c.b16 %v1116, %v1112
    %v1509 = vpack.c.b16 %v1117, %v1113
    %v1510 = vpack.c.b16 %v1118, %v1114
    %v1511 = vpack.c.b16 %v1119, %v1115
    %v1512 = vpack.c.b16 %v1124, %v1120
    %v1513 = vpack.c.b16 %v1125, %v1121
    %v1514 = vpack.c.b16 %v1126, %v1122
    %v1515 = vpack.c.b16 %v1127, %v1123
    %v1516 = vpack.c.b16 %v1132, %v1128
    %v1517 = vpack.c.b16 %v1133, %v1129
    %v1518 = vpack.c.b16 %v1134, %v1130
    %v1519 = vpack.c.b16 %v1135, %v1131
    %v1520 = vpack.c.b16 %v1140, %v1136
    %v1521 = vpack.c.b16 %v1141, %v1137
    %v1522 = vpack.c.b16 %v1142, %v1138
    %v1523 = vpack.c.b16 %v1143, %v1139
    %v1524 = vpack.c.b16 %v1148, %v1144
    %v1525 = vpack.c.b16 %v1149, %v1145
    %v1526 = vpack.c.b16 %v1150, %v1146
    %v1527 = vpack.c.b16 %v1151, %v1147
    %v1528 = vpack.c.b16 %v1156, %v1152
    %v1529 = vpack.c.b16 %v1157, %v1153
    %v1530 = vpack.c.b16 %v1158, %v1154
    %v1531 = vpack.c.b16 %v1159, %v1155
    %v1532 = vpack.c.b16 %v1164, %v1160
    %v1533 = vpack.c.b16 %v1165, %v1161
    %v1534 = vpack.c.b16 %v1166, %v1162
    %v1535 = vpack.c.b16 %v1167, %v1163
    %v1536 = vpack.c.b16 %v1172, %v1168
    %v1537 = vpack.c.b16 %v1173, %v1169
    %v1538 = vpack.c.b16 %v1174, %v1170
    %v1539 = vpack.c.b16 %v1175, %v1171
    %v1540 = vpack.c.b16 %v1180, %v1176
    %v1541 = vpack.c.b16 %v1181, %v1177
    %v1542 = vpack.c.b16 %v1182, %v1178
    %v1543 = vpack.c.b16 %v1183, %v1179
    %v1544 = vpack.c.b16 %v1188, %v1184
    %v1545 = vpack.c.b16 %v1189, %v1185
    %v1546 = vpack.c.b16 %v1190, %v1186
    %v1547 = vpack.c.b16 %v1191, %v1187
    %v1548 = vpack.c.b16 %v1196, %v1192
    %v1549 = vpack.c.b16 %v1197, %v1193
    %v1550 = vpack.c.b16 %v1198, %v1194
    %v1551 = vpack.c.b16 %v1199, %v1195
    %v1552 = vpack.c.b16 %v1204, %v1200
    %v1553 = vpack.c.b16 %v1205, %v1201
    %v1554 = vpack.c.b16 %v1206, %v1202
    %v1555 = vpack.c.b16 %v1207, %v1203
    %v1556 = vpack.c.b16 %v1212, %v1208
    %v1557 = vpack.c.b16 %v1213, %v1209
    %v1558 = vpack.c.b16 %v1214, %v1210
    %v1559 = vpack.c.b16 %v1215, %v1211
    %v1560 = vpack.c.b16 %v1220, %v1216
    %v1561 = vpack.c.b16 %v1221, %v1217
    %v1562 = vpack.c.b16 %v1222, %v1218
    %v1563 = vpack.c.b16 %v1223, %v1219
    %v1564 = vpack.c.b16 %v1228, %v1224
    %v1565 = vpack.c.b16 %v1229, %v1225
    %v1566 = vpack.c.b16 %v1230, %v1226
    %v1567 = vpack.c.b16 %v1231, %v1227
    %v1568 = vpack.c.b16 %v1236, %v1232
    %v1569 = vpack.c.b16 %v1237, %v1233
    %v1570 = vpack.c.b16 %v1238, %v1234
    %v1571 = vpack.c.b16 %v1239, %v1235
    %v1572 = vpack.c.b16 %v1244, %v1240
    %v1573 = vpack.c.b16 %v1245, %v1241
    %v1574 = vpack.c.b16 %v1246, %v1242
    %v1575 = vpack.c.b16 %v1247, %v1243
    %v1576 = vpack.c.b16 %v1252, %v1248
    %v1577 = vpack.c.b16 %v1253, %v1249
    %v1578 = vpack.c.b16 %v1254, %v1250
    %v1579 = vpack.c.b16 %v1255, %v1251
    %v1580 = vpack.c.b16 %v1260, %v1256
    %v1581 = vpack.c.b16 %v1261, %v1257
    %v1582 = vpack.c.b16 %v1262, %v1258
    %v1583 = vpack.c.b16 %v1263, %v1259
    %v1584 = vpack.c.b16 %v1268, %v1264
    %v1585 = vpack.c.b16 %v1269, %v1265
    %v1586 = vpack.c.b16 %v1270, %v1266
    %v1587 = vpack.c.b16 %v1271, %v1267
    %v1588 = vpack.c.b16 %v1276, %v1272
    %v1589 = vpack.c.b16 %v1277, %v1273
    %v1590 = vpack.c.b16 %v1278, %v1274
    %v1591 = vpack.c.b16 %v1279, %v1275
    %v1592 = vpack.c.b16 %v1284, %v1280
    %v1593 = vpack.c.b16 %v1285, %v1281
    %v1594 = vpack.c.b16 %v1286, %v1282
    %v1595 = vpack.c.b16 %v1287, %v1283
    %v1596 = vpack.c.b16 %v1292, %v1288
    %v1597 = vpack.c.b16 %v1293, %v1289
    %v1598 = vpack.c.b16 %v1294, %v1290
    %v1599 = vpack.c.b16 %v1295, %v1291
    %v1600 = vpack.c.b16 %v1300, %v1296
    %v1601 = vpack.c.b16 %v1301, %v1297
    %v1602 = vpack.c.b16 %v1302, %v1298
    %v1603 = vpack.c.b16 %v1303, %v1299
    %v1604 = vpack.c.b16 %v1308, %v1304
    %v1605 = vpack.c.b16 %v1309, %v1305
    %v1606 = vpack.c.b16 %v1310, %v1306
    %v1607 = vpack.c.b16 %v1311, %v1307
    %v1608 = vpack.c.b16 %v1316, %v1312
    %v1609 = vpack.c.b16 %v1317, %v1313
    %v1610 = vpack.c.b16 %v1318, %v1314
    %v1611 = vpack.c.b16 %v1319, %v1315
    %v1612 = vpack.c.b16 %v1324, %v1320
    %v1613 = vpack.c.b16 %v1325, %v1321
    %v1614 = vpack.c.b16 %v1326, %v1322
    %v1615 = vpack.c.b16 %v1327, %v1323
    %v1616 = vpack.c.b16 %v1332, %v1328
    %v1617 = vpack.c.b16 %v1333, %v1329
    %v1618 = vpack.c.b16 %v1334, %v1330
    %v1619 = vpack.c.b16 %v1335, %v1331
    %v1620 = vpack.c.b16 %v1340, %v1336
    %v1621 = vpack.c.b16 %v1341, %v1337
    %v1622 = vpack.c.b16 %v1342, %v1338
    %v1623 = vpack.c.b16 %v1343, %v1339
    %v1624 = vpack.c.b16 %v1348, %v1344
    %v1625 = vpack.c.b16 %v1349, %v1345
    %v1626 = vpack.c.b16 %v1350, %v1346
    %v1627 = vpack.c.b16 %v1351, %v1347
    %v1628 = vpack.c.b16 %v1356, %v1352
    %v1629 = vpack.c.b16 %v1357, %v1353
    %v1630 = vpack.c.b16 %v1358, %v1354
    %v1631 = vpack.c.b16 %v1359, %v1355
    %v1632 = vpack.c.b16 %v1364, %v1360
    %v1633 = vpack.c.b16 %v1365, %v1361
    %v1634 = vpack.c.b16 %v1366, %v1362
    %v1635 = vpack.c.b16 %v1367, %v1363
    %v1636 = vpack.c.b16 %v1372, %v1368
    %v1637 = vpack.c.b16 %v1373, %v1369
    %v1638 = vpack.c.b16 %v1374, %v1370
    %v1639 = vpack.c.b16 %v1375, %v1371
    %v1640 = vpack.c.b16 %v1380, %v1376
    %v1641 = vpack.c.b16 %v1381, %v1377
    %v1642 = vpack.c.b16 %v1382, %v1378
    %v1643 = vpack.c.b16 %v1383, %v1379
    %v1644 = vpack.c.b16 %v1388, %v1384
    %v1645 = vpack.c.b16 %v1389, %v1385
    %v1646 = vpack.c.b16 %v1390, %v1386
    %v1647 = vpack.c.b16 %v1391, %v1387
    %1904 = vmatpush.bf16.msra.mxu0 %v1420
    %1905 = vmatpush.bf16.msra.mxu0 %v1416
    %1906 = vmatpush.bf16.msra.mxu0 %v1412
    %1907 = vmatpush.bf16.msra.mxu0 %v1408
    %1908 = vmatpush.bf16.msra.mxu0 %v1404
    %1909 = vmatpush.bf16.msra.mxu0 %v1400
    %1910 = vmatpush.bf16.msra.mxu0 %v1396
    %1911 = vmatpush.bf16.msra.mxu0 %v1392
    %1912 = vmatmul.bf16.gmra.mxu0 %v351
    %v1913 = vpop.f32.mrf.mxu0
    %v1914 = vadd.f32 %v616, %v1913
    %v1915 = vpop.f32.mrf.mxu0
    %1916 = vdwg.mxu0
    %1917 = vmatpush.bf16.msra.mxu0 %v1452
    %1918 = vmatpush.bf16.msra.mxu0 %v1448
    %1919 = vmatpush.bf16.msra.mxu0 %v1444
    %1920 = vmatpush.bf16.msra.mxu0 %v1440
    %1921 = vmatpush.bf16.msra.mxu0 %v1436
    %1922 = vmatpush.bf16.msra.mxu0 %v1432
    %1923 = vmatpush.bf16.msra.mxu0 %v1428
    %1924 = vmatpush.bf16.msra.mxu0 %v1424
    %1925 = vmatmul.bf16.gmra.mxu0 %v352
    %v1926 = vpop.f32.mrf.mxu0
    %v1927 = vadd.f32 %v1914, %v1926
    %v1928 = vpop.f32.mrf.mxu0
    %1929 = vdwg.mxu0
    %1930 = vmatpush.bf16.msra.mxu0 %v1484
    %1931 = vmatpush.bf16.msra.mxu0 %v1480
    %1932 = vmatpush.bf16.msra.mxu0 %v1476
    %1933 = vmatpush.bf16.msra.mxu0 %v1472
    %1934 = vmatpush.bf16.msra.mxu0 %v1468
    %1935 = vmatpush.bf16.msra.mxu0 %v1464
    %1936 = vmatpush.bf16.msra.mxu0 %v1460
    %1937 = vmatpush.bf16.msra.mxu0 %v1456
    %1938 = vmatmul.bf16.gmra.mxu0 %v353
    %v1939 = vpop.f32.mrf.mxu0
    %v1940 = vadd.f32 %v1927, %v1939
    %v1941 = vpop.f32.mrf.mxu0
    %1942 = vdwg.mxu0
    %1943 = vmatpush.bf16.msra.mxu0 %v1516
    %1944 = vmatpush.bf16.msra.mxu0 %v1512
    %1945 = vmatpush.bf16.msra.mxu0 %v1508
    %1946 = vmatpush.bf16.msra.mxu0 %v1504
    %1947 = vmatpush.bf16.msra.mxu0 %v1500
    %1948 = vmatpush.bf16.msra.mxu0 %v1496
    %1949 = vmatpush.bf16.msra.mxu0 %v1492
    %1950 = vmatpush.bf16.msra.mxu0 %v1488
    %1951 = vmatmul.bf16.gmra.mxu0 %v354
    %v1952 = vpop.f32.mrf.mxu0
    %v1953 = vadd.f32 %v1940, %v1952
    %v1954 = vpop.f32.mrf.mxu0
    %1955 = vdwg.mxu0
    %1956 = vmatpush.bf16.msra.mxu0 %v1548
    %1957 = vmatpush.bf16.msra.mxu0 %v1544
    %1958 = vmatpush.bf16.msra.mxu0 %v1540
    %1959 = vmatpush.bf16.msra.mxu0 %v1536
    %1960 = vmatpush.bf16.msra.mxu0 %v1532
    %1961 = vmatpush.bf16.msra.mxu0 %v1528
    %1962 = vmatpush.bf16.msra.mxu0 %v1524
    %1963 = vmatpush.bf16.msra.mxu0 %v1520
    %1964 = vmatmul.bf16.gmra.mxu0 %v355
    %v1965 = vpop.f32.mrf.mxu0
    %v1966 = vadd.f32 %v1953, %v1965
    %v1967 = vpop.f32.mrf.mxu0
    %1968 = vdwg.mxu0
    %1969 = vmatpush.bf16.msra.mxu0 %v1580
    %1970 = vmatpush.bf16.msra.mxu0 %v1576
    %1971 = vmatpush.bf16.msra.mxu0 %v1572
    %1972 = vmatpush.bf16.msra.mxu0 %v1568
    %1973 = vmatpush.bf16.msra.mxu0 %v1564
    %1974 = vmatpush.bf16.msra.mxu0 %v1560
    %1975 = vmatpush.bf16.msra.mxu0 %v1556
    %1976 = vmatpush.bf16.msra.mxu0 %v1552
    %1977 = vmatmul.bf16.gmra.mxu0 %v356
    %v1978 = vpop.f32.mrf.mxu0
    %v1979 = vadd.f32 %v1966, %v1978
    %v1980 = vpop.f32.mrf.mxu0
    %1981 = vdwg.mxu0
    %1982 = vmatpush.bf16.msra.mxu0 %v1612
    %1983 = vmatpush.bf16.msra.mxu0 %v1608
    %1984 = vmatpush.bf16.msra.mxu0 %v1604
    %1985 = vmatpush.bf16.msra.mxu0 %v1600
    %1986 = vmatpush.bf16.msra.mxu0 %v1596
    %1987 = vmatpush.bf16.msra.mxu0 %v1592
    %1988 = vmatpush.bf16.msra.mxu0 %v1588
    %1989 = vmatpush.bf16.msra.mxu0 %v1584
    %1990 = vmatmul.bf16.gmra.mxu0 %v357
    %v1991 = vpop.f32.mrf.mxu0
    %v1992 = vadd.f32 %v1979, %v1991
    %v1993 = vpop.f32.mrf.mxu0
    %1994 = vdwg.mxu0
    %1995 = vmatpush.bf16.msra.mxu0 %v1644
    %1996 = vmatpush.bf16.msra.mxu0 %v1640
    %1997 = vmatpush.bf16.msra.mxu0 %v1636
    %1998 = vmatpush.bf16.msra.mxu0 %v1632
    %1999 = vmatpush.bf16.msra.mxu0 %v1628
    %2000 = vmatpush.bf16.msra.mxu0 %v1624
    %2001 = vmatpush.bf16.msra.mxu0 %v1620
    %2002 = vmatpush.bf16.msra.mxu0 %v1616
    %2003 = vmatmul.bf16.gmra.mxu0 %v358
    %v2004 = vpop.f32.mrf.mxu0
    %v2005 = vadd.f32 %v1992, %v2004
    %v2006 = vpop.f32.mrf.mxu0
    %2007 = vdwg.mxu0
    %2008 = vmatpush.bf16.msra.mxu0 %v1421
    %2009 = vmatpush.bf16.msra.mxu0 %v1417
    %2010 = vmatpush.bf16.msra.mxu0 %v1413
    %2011 = vmatpush.bf16.msra.mxu0 %v1409
    %2012 = vmatpush.bf16.msra.mxu0 %v1405
    %2013 = vmatpush.bf16.msra.mxu0 %v1401
    %2014 = vmatpush.bf16.msra.mxu0 %v1397
    %2015 = vmatpush.bf16.msra.mxu0 %v1393
    %2016 = vmatmul.bf16.gmra.mxu0 %v351
    %v2017 = vpop.f32.mrf.mxu0
    %v2018 = vadd.f32 %v617, %v2017
    %v2019 = vpop.f32.mrf.mxu0
    %2020 = vdwg.mxu0
    %2021 = vmatpush.bf16.msra.mxu0 %v1453
    %2022 = vmatpush.bf16.msra.mxu0 %v1449
    %2023 = vmatpush.bf16.msra.mxu0 %v1445
    %2024 = vmatpush.bf16.msra.mxu0 %v1441
    %2025 = vmatpush.bf16.msra.mxu0 %v1437
    %2026 = vmatpush.bf16.msra.mxu0 %v1433
    %2027 = vmatpush.bf16.msra.mxu0 %v1429
    %2028 = vmatpush.bf16.msra.mxu0 %v1425
    %2029 = vmatmul.bf16.gmra.mxu0 %v352
    %v2030 = vpop.f32.mrf.mxu0
    %v2031 = vadd.f32 %v2018, %v2030
    %v2032 = vpop.f32.mrf.mxu0
    %2033 = vdwg.mxu0
    %2034 = vmatpush.bf16.msra.mxu0 %v1485
    %2035 = vmatpush.bf16.msra.mxu0 %v1481
    %2036 = vmatpush.bf16.msra.mxu0 %v1477
    %2037 = vmatpush.bf16.msra.mxu0 %v1473
    %2038 = vmatpush.bf16.msra.mxu0 %v1469
    %2039 = vmatpush.bf16.msra.mxu0 %v1465
    %2040 = vmatpush.bf16.msra.mxu0 %v1461
    %2041 = vmatpush.bf16.msra.mxu0 %v1457
    %2042 = vmatmul.bf16.gmra.mxu0 %v353
    %v2043 = vpop.f32.mrf.mxu0
    %v2044 = vadd.f32 %v2031, %v2043
    %v2045 = vpop.f32.mrf.mxu0
    %2046 = vdwg.mxu0
    %2047 = vmatpush.bf16.msra.mxu0 %v1517
    %2048 = vmatpush.bf16.msra.mxu0 %v1513
    %2049 = vmatpush.bf16.msra.mxu0 %v1509
    %2050 = vmatpush.bf16.msra.mxu0 %v1505
    %2051 = vmatpush.bf16.msra.mxu0 %v1501
    %2052 = vmatpush.bf16.msra.mxu0 %v1497
    %2053 = vmatpush.bf16.msra.mxu0 %v1493
    %2054 = vmatpush.bf16.msra.mxu0 %v1489
    %2055 = vmatmul.bf16.gmra.mxu0 %v354
    %v2056 = vpop.f32.mrf.mxu0
    %v2057 = vadd.f32 %v2044, %v2056
    %v2058 = vpop.f32.mrf.mxu0
    %2059 = vdwg.mxu0
    %2060 = vmatpush.bf16.msra.mxu0 %v1549
    %2061 = vmatpush.bf16.msra.mxu0 %v1545
    %2062 = vmatpush.bf16.msra.mxu0 %v1541
    %2063 = vmatpush.bf16.msra.mxu0 %v1537
    %2064 = vmatpush.bf16.msra.mxu0 %v1533
    %2065 = vmatpush.bf16.msra.mxu0 %v1529
    %2066 = vmatpush.bf16.msra.mxu0 %v1525
    %2067 = vmatpush.bf16.msra.mxu0 %v1521
    %2068 = vmatmul.bf16.gmra.mxu0 %v355
    %v2069 = vpop.f32.mrf.mxu0
    %v2070 = vadd.f32 %v2057, %v2069
    %v2071 = vpop.f32.mrf.mxu0
    %2072 = vdwg.mxu0
    %2073 = vmatpush.bf16.msra.mxu0 %v1581
    %2074 = vmatpush.bf16.msra.mxu0 %v1577
    %2075 = vmatpush.bf16.msra.mxu0 %v1573
    %2076 = vmatpush.bf16.msra.mxu0 %v1569
    %2077 = vmatpush.bf16.msra.mxu0 %v1565
    %2078 = vmatpush.bf16.msra.mxu0 %v1561
    %2079 = vmatpush.bf16.msra.mxu0 %v1557
    %2080 = vmatpush.bf16.msra.mxu0 %v1553
    %2081 = vmatmul.bf16.gmra.mxu0 %v356
    %v2082 = vpop.f32.mrf.mxu0
    %v2083 = vadd.f32 %v2070, %v2082
    %v2084 = vpop.f32.mrf.mxu0
    %2085 = vdwg.mxu0
    %2086 = vmatpush.bf16.msra.mxu0 %v1613
    %2087 = vmatpush.bf16.msra.mxu0 %v1609
    %2088 = vmatpush.bf16.msra.mxu0 %v1605
    %2089 = vmatpush.bf16.msra.mxu0 %v1601
    %2090 = vmatpush.bf16.msra.mxu0 %v1597
    %2091 = vmatpush.bf16.msra.mxu0 %v1593
    %2092 = vmatpush.bf16.msra.mxu0 %v1589
    %2093 = vmatpush.bf16.msra.mxu0 %v1585
    %2094 = vmatmul.bf16.gmra.mxu0 %v357
    %v2095 = vpop.f32.mrf.mxu0
    %v2096 = vadd.f32 %v2083, %v2095
    %v2097 = vpop.f32.mrf.mxu0
    %2098 = vdwg.mxu0
    %2099 = vmatpush.bf16.msra.mxu0 %v1645
    %2100 = vmatpush.bf16.msra.mxu0 %v1641
    %2101 = vmatpush.bf16.msra.mxu0 %v1637
    %2102 = vmatpush.bf16.msra.mxu0 %v1633
    %2103 = vmatpush.bf16.msra.mxu0 %v1629
    %2104 = vmatpush.bf16.msra.mxu0 %v1625
    %2105 = vmatpush.bf16.msra.mxu0 %v1621
    %2106 = vmatpush.bf16.msra.mxu0 %v1617
    %2107 = vmatmul.bf16.gmra.mxu0 %v358
    %v2108 = vpop.f32.mrf.mxu0
    %v2109 = vadd.f32 %v2096, %v2108
    %v2110 = vpop.f32.mrf.mxu0
    %2111 = vdwg.mxu0
    %2112 = vmatpush.bf16.msra.mxu0 %v1422
    %2113 = vmatpush.bf16.msra.mxu0 %v1418
    %2114 = vmatpush.bf16.msra.mxu0 %v1414
    %2115 = vmatpush.bf16.msra.mxu0 %v1410
    %2116 = vmatpush.bf16.msra.mxu0 %v1406
    %2117 = vmatpush.bf16.msra.mxu0 %v1402
    %2118 = vmatpush.bf16.msra.mxu0 %v1398
    %2119 = vmatpush.bf16.msra.mxu0 %v1394
    %2120 = vmatmul.bf16.gmra.mxu0 %v351
    %v2121 = vpop.f32.mrf.mxu0
    %v2122 = vadd.f32 %v618, %v2121
    %v2123 = vpop.f32.mrf.mxu0
    %2124 = vdwg.mxu0
    %2125 = vmatpush.bf16.msra.mxu0 %v1454
    %2126 = vmatpush.bf16.msra.mxu0 %v1450
    %2127 = vmatpush.bf16.msra.mxu0 %v1446
    %2128 = vmatpush.bf16.msra.mxu0 %v1442
    %2129 = vmatpush.bf16.msra.mxu0 %v1438
    %2130 = vmatpush.bf16.msra.mxu0 %v1434
    %2131 = vmatpush.bf16.msra.mxu0 %v1430
    %2132 = vmatpush.bf16.msra.mxu0 %v1426
    %2133 = vmatmul.bf16.gmra.mxu0 %v352
    %v2134 = vpop.f32.mrf.mxu0
    %v2135 = vadd.f32 %v2122, %v2134
    %v2136 = vpop.f32.mrf.mxu0
    %2137 = vdwg.mxu0
    %2138 = vmatpush.bf16.msra.mxu0 %v1486
    %2139 = vmatpush.bf16.msra.mxu0 %v1482
    %2140 = vmatpush.bf16.msra.mxu0 %v1478
    %2141 = vmatpush.bf16.msra.mxu0 %v1474
    %2142 = vmatpush.bf16.msra.mxu0 %v1470
    %2143 = vmatpush.bf16.msra.mxu0 %v1466
    %2144 = vmatpush.bf16.msra.mxu0 %v1462
    %2145 = vmatpush.bf16.msra.mxu0 %v1458
    %2146 = vmatmul.bf16.gmra.mxu0 %v353
    %v2147 = vpop.f32.mrf.mxu0
    %v2148 = vadd.f32 %v2135, %v2147
    %v2149 = vpop.f32.mrf.mxu0
    %2150 = vdwg.mxu0
    %2151 = vmatpush.bf16.msra.mxu0 %v1518
    %2152 = vmatpush.bf16.msra.mxu0 %v1514
    %2153 = vmatpush.bf16.msra.mxu0 %v1510
    %2154 = vmatpush.bf16.msra.mxu0 %v1506
    %2155 = vmatpush.bf16.msra.mxu0 %v1502
    %2156 = vmatpush.bf16.msra.mxu0 %v1498
    %2157 = vmatpush.bf16.msra.mxu0 %v1494
    %2158 = vmatpush.bf16.msra.mxu0 %v1490
    %2159 = vmatmul.bf16.gmra.mxu0 %v354
    %v2160 = vpop.f32.mrf.mxu0
    %v2161 = vadd.f32 %v2148, %v2160
    %v2162 = vpop.f32.mrf.mxu0
    %2163 = vdwg.mxu0
    %2164 = vmatpush.bf16.msra.mxu0 %v1550
    %2165 = vmatpush.bf16.msra.mxu0 %v1546
    %2166 = vmatpush.bf16.msra.mxu0 %v1542
    %2167 = vmatpush.bf16.msra.mxu0 %v1538
    %2168 = vmatpush.bf16.msra.mxu0 %v1534
    %2169 = vmatpush.bf16.msra.mxu0 %v1530
    %2170 = vmatpush.bf16.msra.mxu0 %v1526
    %2171 = vmatpush.bf16.msra.mxu0 %v1522
    %2172 = vmatmul.bf16.gmra.mxu0 %v355
    %v2173 = vpop.f32.mrf.mxu0
    %v2174 = vadd.f32 %v2161, %v2173
    %v2175 = vpop.f32.mrf.mxu0
    %2176 = vdwg.mxu0
    %2177 = vmatpush.bf16.msra.mxu0 %v1582
    %2178 = vmatpush.bf16.msra.mxu0 %v1578
    %2179 = vmatpush.bf16.msra.mxu0 %v1574
    %2180 = vmatpush.bf16.msra.mxu0 %v1570
    %2181 = vmatpush.bf16.msra.mxu0 %v1566
    %2182 = vmatpush.bf16.msra.mxu0 %v1562
    %2183 = vmatpush.bf16.msra.mxu0 %v1558
    %2184 = vmatpush.bf16.msra.mxu0 %v1554
    %2185 = vmatmul.bf16.gmra.mxu0 %v356
    %v2186 = vpop.f32.mrf.mxu0
    %v2187 = vadd.f32 %v2174, %v2186
    %v2188 = vpop.f32.mrf.mxu0
    %2189 = vdwg.mxu0
    %2190 = vmatpush.bf16.msra.mxu0 %v1614
    %2191 = vmatpush.bf16.msra.mxu0 %v1610
    %2192 = vmatpush.bf16.msra.mxu0 %v1606
    %2193 = vmatpush.bf16.msra.mxu0 %v1602
    %2194 = vmatpush.bf16.msra.mxu0 %v1598
    %2195 = vmatpush.bf16.msra.mxu0 %v1594
    %2196 = vmatpush.bf16.msra.mxu0 %v1590
    %2197 = vmatpush.bf16.msra.mxu0 %v1586
    %2198 = vmatmul.bf16.gmra.mxu0 %v357
    %v2199 = vpop.f32.mrf.mxu0
    %v2200 = vadd.f32 %v2187, %v2199
    %v2201 = vpop.f32.mrf.mxu0
    %2202 = vdwg.mxu0
    %2203 = vmatpush.bf16.msra.mxu0 %v1646
    %2204 = vmatpush.bf16.msra.mxu0 %v1642
    %2205 = vmatpush.bf16.msra.mxu0 %v1638
    %2206 = vmatpush.bf16.msra.mxu0 %v1634
    %2207 = vmatpush.bf16.msra.mxu0 %v1630
    %2208 = vmatpush.bf16.msra.mxu0 %v1626
    %2209 = vmatpush.bf16.msra.mxu0 %v1622
    %2210 = vmatpush.bf16.msra.mxu0 %v1618
    %2211 = vmatmul.bf16.gmra.mxu0 %v358
    %v2212 = vpop.f32.mrf.mxu0
    %v2213 = vadd.f32 %v2200, %v2212
    %v2214 = vpop.f32.mrf.mxu0
    %2215 = vdwg.mxu0
    %2216 = vmatpush.bf16.msra.mxu0 %v1423
    %2217 = vmatpush.bf16.msra.mxu0 %v1419
    %2218 = vmatpush.bf16.msra.mxu0 %v1415
    %2219 = vmatpush.bf16.msra.mxu0 %v1411
    %2220 = vmatpush.bf16.msra.mxu0 %v1407
    %2221 = vmatpush.bf16.msra.mxu0 %v1403
    %2222 = vmatpush.bf16.msra.mxu0 %v1399
    %2223 = vmatpush.bf16.msra.mxu0 %v1395
    %2224 = vmatmul.bf16.gmra.mxu0 %v351
    %v2225 = vpop.f32.mrf.mxu0
    %v2226 = vadd.f32 %v619, %v2225
    %v2227 = vpop.f32.mrf.mxu0
    %2228 = vdwg.mxu0
    %2229 = vmatpush.bf16.msra.mxu0 %v1455
    %2230 = vmatpush.bf16.msra.mxu0 %v1451
    %2231 = vmatpush.bf16.msra.mxu0 %v1447
    %2232 = vmatpush.bf16.msra.mxu0 %v1443
    %2233 = vmatpush.bf16.msra.mxu0 %v1439
    %2234 = vmatpush.bf16.msra.mxu0 %v1435
    %2235 = vmatpush.bf16.msra.mxu0 %v1431
    %2236 = vmatpush.bf16.msra.mxu0 %v1427
    %2237 = vmatmul.bf16.gmra.mxu0 %v352
    %v2238 = vpop.f32.mrf.mxu0
    %v2239 = vadd.f32 %v2226, %v2238
    %v2240 = vpop.f32.mrf.mxu0
    %2241 = vdwg.mxu0
    %2242 = vmatpush.bf16.msra.mxu0 %v1487
    %2243 = vmatpush.bf16.msra.mxu0 %v1483
    %2244 = vmatpush.bf16.msra.mxu0 %v1479
    %2245 = vmatpush.bf16.msra.mxu0 %v1475
    %2246 = vmatpush.bf16.msra.mxu0 %v1471
    %2247 = vmatpush.bf16.msra.mxu0 %v1467
    %2248 = vmatpush.bf16.msra.mxu0 %v1463
    %2249 = vmatpush.bf16.msra.mxu0 %v1459
    %2250 = vmatmul.bf16.gmra.mxu0 %v353
    %v2251 = vpop.f32.mrf.mxu0
    %v2252 = vadd.f32 %v2239, %v2251
    %v2253 = vpop.f32.mrf.mxu0
    %2254 = vdwg.mxu0
    %2255 = vmatpush.bf16.msra.mxu0 %v1519
    %2256 = vmatpush.bf16.msra.mxu0 %v1515
    %2257 = vmatpush.bf16.msra.mxu0 %v1511
    %2258 = vmatpush.bf16.msra.mxu0 %v1507
    %2259 = vmatpush.bf16.msra.mxu0 %v1503
    %2260 = vmatpush.bf16.msra.mxu0 %v1499
    %2261 = vmatpush.bf16.msra.mxu0 %v1495
    %2262 = vmatpush.bf16.msra.mxu0 %v1491
    %2263 = vmatmul.bf16.gmra.mxu0 %v354
    %v2264 = vpop.f32.mrf.mxu0
    %v2265 = vadd.f32 %v2252, %v2264
    %v2266 = vpop.f32.mrf.mxu0
    %2267 = vdwg.mxu0
    %2268 = vmatpush.bf16.msra.mxu0 %v1551
    %2269 = vmatpush.bf16.msra.mxu0 %v1547
    %2270 = vmatpush.bf16.msra.mxu0 %v1543
    %2271 = vmatpush.bf16.msra.mxu0 %v1539
    %2272 = vmatpush.bf16.msra.mxu0 %v1535
    %2273 = vmatpush.bf16.msra.mxu0 %v1531
    %2274 = vmatpush.bf16.msra.mxu0 %v1527
    %2275 = vmatpush.bf16.msra.mxu0 %v1523
    %2276 = vmatmul.bf16.gmra.mxu0 %v355
    %v2277 = vpop.f32.mrf.mxu0
    %v2278 = vadd.f32 %v2265, %v2277
    %v2279 = vpop.f32.mrf.mxu0
    %2280 = vdwg.mxu0
    %2281 = vmatpush.bf16.msra.mxu0 %v1583
    %2282 = vmatpush.bf16.msra.mxu0 %v1579
    %2283 = vmatpush.bf16.msra.mxu0 %v1575
    %2284 = vmatpush.bf16.msra.mxu0 %v1571
    %2285 = vmatpush.bf16.msra.mxu0 %v1567
    %2286 = vmatpush.bf16.msra.mxu0 %v1563
    %2287 = vmatpush.bf16.msra.mxu0 %v1559
    %2288 = vmatpush.bf16.msra.mxu0 %v1555
    %2289 = vmatmul.bf16.gmra.mxu0 %v356
    %v2290 = vpop.f32.mrf.mxu0
    %v2291 = vadd.f32 %v2278, %v2290
    %v2292 = vpop.f32.mrf.mxu0
    %2293 = vdwg.mxu0
    %2294 = vmatpush.bf16.msra.mxu0 %v1615
    %2295 = vmatpush.bf16.msra.mxu0 %v1611
    %2296 = vmatpush.bf16.msra.mxu0 %v1607
    %2297 = vmatpush.bf16.msra.mxu0 %v1603
    %2298 = vmatpush.bf16.msra.mxu0 %v1599
    %2299 = vmatpush.bf16.msra.mxu0 %v1595
    %2300 = vmatpush.bf16.msra.mxu0 %v1591
    %2301 = vmatpush.bf16.msra.mxu0 %v1587
    %2302 = vmatmul.bf16.gmra.mxu0 %v357
    %v2303 = vpop.f32.mrf.mxu0
    %v2304 = vadd.f32 %v2291, %v2303
    %v2305 = vpop.f32.mrf.mxu0
    %2306 = vdwg.mxu0
    %2307 = vmatpush.bf16.msra.mxu0 %v1647
    %2308 = vmatpush.bf16.msra.mxu0 %v1643
    %2309 = vmatpush.bf16.msra.mxu0 %v1639
    %2310 = vmatpush.bf16.msra.mxu0 %v1635
    %2311 = vmatpush.bf16.msra.mxu0 %v1631
    %2312 = vmatpush.bf16.msra.mxu0 %v1627
    %2313 = vmatpush.bf16.msra.mxu0 %v1623
    %2314 = vmatpush.bf16.msra.mxu0 %v1619
    %2315 = vmatmul.bf16.gmra.mxu0 %v358
    %v2316 = vpop.f32.mrf.mxu0
    %v2317 = vadd.f32 %v2304, %v2316
    %v2318 = vpop.f32.mrf.mxu0
    %2319 = vdwg.mxu0
    %v2320 = vmax.f32 %v2005, 0.0
    %v2321 = vmax.f32 %v2109, 0.0
    %v2322 = vmax.f32 %v2213, 0.0
    %v2323 = vmax.f32 %v2317, 0.0
    %v2324 = vpack.c.bf16 %v2320, %v2320
    %v2325 = vpack.c.bf16 %v2321, %v2321
    %v2326 = vpack.c.bf16 %v2322, %v2322
    %v2327 = vpack.c.bf16 %v2323, %v2323
    %v2328 = vld [vmem:[#allocation6] sm:$0xf]
    %v2329 = vld [vmem:[#allocation6 + $0x4] sm:$0xf]
    %v2330 = vld [vmem:[#allocation6 + $0x8] sm:$0xf]
    %v2331 = vld [vmem:[#allocation6 + $0xc] sm:$0xf]
    %v2332 = vld [vmem:[#allocation6 + $0x10] sm:$0xf]
    %v2333 = vld [vmem:[#allocation6 + $0x14] sm:$0xf]
    %v2334 = vld [vmem:[#allocation6 + $0x18] sm:$0xf]
    %v2335 = vld [vmem:[#allocation6 + $0x1c] sm:$0xf]
    %v2336 = vld [vmem:[#allocation6 + $0x20] sm:$0xf]
    %v2337 = vld [vmem:[#allocation6 + $0x24] sm:$0xf]
    %v2338 = vld [vmem:[#allocation6 + $0x28] sm:$0xf]
    %v2339 = vld [vmem:[#allocation6 + $0x2c] sm:$0xf]
    %v2340 = vld [vmem:[#allocation6 + $0x30] sm:$0xf]
    %v2341 = vld [vmem:[#allocation6 + $0x34] sm:$0xf]
    %v2342 = vld [vmem:[#allocation6 + $0x38] sm:$0xf]
    %v2343 = vld [vmem:[#allocation6 + $0x3c] sm:$0xf]
    %v2344 = vld [vmem:[#allocation6 + $0x40] sm:$0xf]
    %v2345 = vld [vmem:[#allocation6 + $0x44] sm:$0xf]
    %v2346 = vld [vmem:[#allocation6 + $0x48] sm:$0xf]
    %v2347 = vld [vmem:[#allocation6 + $0x4c] sm:$0xf]
    %v2348 = vld [vmem:[#allocation6 + $0x50] sm:$0xf]
    %v2349 = vld [vmem:[#allocation6 + $0x54] sm:$0xf]
    %v2350 = vld [vmem:[#allocation6 + $0x58] sm:$0xf]
    %v2351 = vld [vmem:[#allocation6 + $0x5c] sm:$0xf]
    %v2352 = vld [vmem:[#allocation6 + $0x60] sm:$0xf]
    %v2353 = vld [vmem:[#allocation6 + $0x64] sm:$0xf]
    %v2354 = vld [vmem:[#allocation6 + $0x68] sm:$0xf]
    %v2355 = vld [vmem:[#allocation6 + $0x6c] sm:$0xf]
    %v2356 = vld [vmem:[#allocation6 + $0x70] sm:$0xf]
    %v2357 = vld [vmem:[#allocation6 + $0x74] sm:$0xf]
    %v2358 = vld [vmem:[#allocation6 + $0x78] sm:$0xf]
    %v2359 = vld [vmem:[#allocation6 + $0x7c] sm:$0xf]
    %v2360 = vld [vmem:[#allocation6 + $0x80] sm:$0xf]
    %v2361 = vld [vmem:[#allocation6 + $0x84] sm:$0xf]
    %v2362 = vld [vmem:[#allocation6 + $0x88] sm:$0xf]
    %v2363 = vld [vmem:[#allocation6 + $0x8c] sm:$0xf]
    %v2364 = vld [vmem:[#allocation6 + $0x90] sm:$0xf]
    %v2365 = vld [vmem:[#allocation6 + $0x94] sm:$0xf]
    %v2366 = vld [vmem:[#allocation6 + $0x98] sm:$0xf]
    %v2367 = vld [vmem:[#allocation6 + $0x9c] sm:$0xf]
    %v2368 = vld [vmem:[#allocation6 + $0xa0] sm:$0xf]
    %v2369 = vld [vmem:[#allocation6 + $0xa4] sm:$0xf]
    %v2370 = vld [vmem:[#allocation6 + $0xa8] sm:$0xf]
    %v2371 = vld [vmem:[#allocation6 + $0xac] sm:$0xf]
    %v2372 = vld [vmem:[#allocation6 + $0xb0] sm:$0xf]
    %v2373 = vld [vmem:[#allocation6 + $0xb4] sm:$0xf]
    %v2374 = vld [vmem:[#allocation6 + $0xb8] sm:$0xf]
    %v2375 = vld [vmem:[#allocation6 + $0xbc] sm:$0xf]
    %v2376 = vld [vmem:[#allocation6 + $0xc0] sm:$0xf]
    %v2377 = vld [vmem:[#allocation6 + $0xc4] sm:$0xf]
    %v2378 = vld [vmem:[#allocation6 + $0xc8] sm:$0xf]
    %v2379 = vld [vmem:[#allocation6 + $0xcc] sm:$0xf]
    %v2380 = vld [vmem:[#allocation6 + $0xd0] sm:$0xf]
    %v2381 = vld [vmem:[#allocation6 + $0xd4] sm:$0xf]
    %v2382 = vld [vmem:[#allocation6 + $0xd8] sm:$0xf]
    %v2383 = vld [vmem:[#allocation6 + $0xdc] sm:$0xf]
    %v2384 = vld [vmem:[#allocation6 + $0xe0] sm:$0xf]
    %v2385 = vld [vmem:[#allocation6 + $0xe4] sm:$0xf]
    %v2386 = vld [vmem:[#allocation6 + $0xe8] sm:$0xf]
    %v2387 = vld [vmem:[#allocation6 + $0xec] sm:$0xf]
    %v2388 = vld [vmem:[#allocation6 + $0xf0] sm:$0xf]
    %v2389 = vld [vmem:[#allocation6 + $0xf4] sm:$0xf]
    %v2390 = vld [vmem:[#allocation6 + $0xf8] sm:$0xf]
    %v2391 = vld [vmem:[#allocation6 + $0xfc] sm:$0xf]
    %v2393 = vperm.slane %v72, 0
    %v2459 = vunpack.c.l.b16 %v2328
    %v2460 = vunpack.c.l.b16 %v2329
    %v2461 = vunpack.c.l.b16 %v2330
    %v2462 = vunpack.c.l.b16 %v2331
    %v2463 = vunpack.c.l.b16 %v2332
    %v2464 = vunpack.c.l.b16 %v2333
    %v2465 = vunpack.c.l.b16 %v2334
    %v2466 = vunpack.c.l.b16 %v2335
    %v2467 = vunpack.c.l.b16 %v2336
    %v2468 = vunpack.c.l.b16 %v2337
    %v2469 = vunpack.c.l.b16 %v2338
    %v2470 = vunpack.c.l.b16 %v2339
    %v2471 = vunpack.c.l.b16 %v2340
    %v2472 = vunpack.c.l.b16 %v2341
    %v2473 = vunpack.c.l.b16 %v2342
    %v2474 = vunpack.c.l.b16 %v2343
    %v2475 = vunpack.c.l.b16 %v2344
    %v2476 = vunpack.c.l.b16 %v2345
    %v2477 = vunpack.c.l.b16 %v2346
    %v2478 = vunpack.c.l.b16 %v2347
    %v2479 = vunpack.c.l.b16 %v2348
    %v2480 = vunpack.c.l.b16 %v2349
    %v2481 = vunpack.c.l.b16 %v2350
    %v2482 = vunpack.c.l.b16 %v2351
    %v2483 = vunpack.c.l.b16 %v2352
    %v2484 = vunpack.c.l.b16 %v2353
    %v2485 = vunpack.c.l.b16 %v2354
    %v2486 = vunpack.c.l.b16 %v2355
    %v2487 = vunpack.c.l.b16 %v2356
    %v2488 = vunpack.c.l.b16 %v2357
    %v2489 = vunpack.c.l.b16 %v2358
    %v2490 = vunpack.c.l.b16 %v2359
    %v2491 = vunpack.c.l.b16 %v2360
    %v2492 = vunpack.c.l.b16 %v2361
    %v2493 = vunpack.c.l.b16 %v2362
    %v2494 = vunpack.c.l.b16 %v2363
    %v2495 = vunpack.c.l.b16 %v2364
    %v2496 = vunpack.c.l.b16 %v2365
    %v2497 = vunpack.c.l.b16 %v2366
    %v2498 = vunpack.c.l.b16 %v2367
    %v2499 = vunpack.c.l.b16 %v2368
    %v2500 = vunpack.c.l.b16 %v2369
    %v2501 = vunpack.c.l.b16 %v2370
    %v2502 = vunpack.c.l.b16 %v2371
    %v2503 = vunpack.c.l.b16 %v2372
    %v2504 = vunpack.c.l.b16 %v2373
    %v2505 = vunpack.c.l.b16 %v2374
    %v2506 = vunpack.c.l.b16 %v2375
    %v2507 = vunpack.c.l.b16 %v2376
    %v2508 = vunpack.c.l.b16 %v2377
    %v2509 = vunpack.c.l.b16 %v2378
    %v2510 = vunpack.c.l.b16 %v2379
    %v2511 = vunpack.c.l.b16 %v2380
    %v2512 = vunpack.c.l.b16 %v2381
    %v2513 = vunpack.c.l.b16 %v2382
    %v2514 = vunpack.c.l.b16 %v2383
    %v2515 = vunpack.c.l.b16 %v2384
    %v2516 = vunpack.c.l.b16 %v2385
    %v2517 = vunpack.c.l.b16 %v2386
    %v2518 = vunpack.c.l.b16 %v2387
    %v2519 = vunpack.c.l.b16 %v2388
    %v2520 = vunpack.c.l.b16 %v2389
    %v2521 = vunpack.c.l.b16 %v2390
    %v2522 = vunpack.c.l.b16 %v2391
    %v2523 = vpack.c.b16 %v2460, %v2459
    %v2524 = vpack.c.b16 %v2462, %v2461
    %v2525 = vpack.c.b16 %v2464, %v2463
    %v2526 = vpack.c.b16 %v2466, %v2465
    %v2527 = vpack.c.b16 %v2468, %v2467
    %v2528 = vpack.c.b16 %v2470, %v2469
    %v2529 = vpack.c.b16 %v2472, %v2471
    %v2530 = vpack.c.b16 %v2474, %v2473
    %v2531 = vpack.c.b16 %v2476, %v2475
    %v2532 = vpack.c.b16 %v2478, %v2477
    %v2533 = vpack.c.b16 %v2480, %v2479
    %v2534 = vpack.c.b16 %v2482, %v2481
    %v2535 = vpack.c.b16 %v2484, %v2483
    %v2536 = vpack.c.b16 %v2486, %v2485
    %v2537 = vpack.c.b16 %v2488, %v2487
    %v2538 = vpack.c.b16 %v2490, %v2489
    %v2539 = vpack.c.b16 %v2492, %v2491
    %v2540 = vpack.c.b16 %v2494, %v2493
    %v2541 = vpack.c.b16 %v2496, %v2495
    %v2542 = vpack.c.b16 %v2498, %v2497
    %v2543 = vpack.c.b16 %v2500, %v2499
    %v2544 = vpack.c.b16 %v2502, %v2501
    %v2545 = vpack.c.b16 %v2504, %v2503
    %v2546 = vpack.c.b16 %v2506, %v2505
    %v2547 = vpack.c.b16 %v2508, %v2507
    %v2548 = vpack.c.b16 %v2510, %v2509
    %v2549 = vpack.c.b16 %v2512, %v2511
    %v2550 = vpack.c.b16 %v2514, %v2513
    %v2551 = vpack.c.b16 %v2516, %v2515
    %v2552 = vpack.c.b16 %v2518, %v2517
    %v2553 = vpack.c.b16 %v2520, %v2519
    %v2554 = vpack.c.b16 %v2522, %v2521
    %2587 = vmatpush.bf16.msra.mxu0 %v2530
    %2588 = vmatpush.bf16.msra.mxu0 %v2529
    %2589 = vmatpush.bf16.msra.mxu0 %v2528
    %2590 = vmatpush.bf16.msra.mxu0 %v2527
    %2591 = vmatpush.bf16.msra.mxu0 %v2526
    %2592 = vmatpush.bf16.msra.mxu0 %v2525
    %2593 = vmatpush.bf16.msra.mxu0 %v2524
    %2594 = vmatpush.bf16.msra.mxu0 %v2523
    %2595 = vmatmul.bf16.gmra.mxu0 %v2324
    %v2596 = vpop.f32.mrf.mxu0
    %v2597 = vadd.f32 %v2393, %v2596
    %v2598 = vpop.f32.mrf.mxu0
    %2599 = vdwg.mxu0
    %2600 = vmatpush.bf16.msra.mxu0 %v2538
    %2601 = vmatpush.bf16.msra.mxu0 %v2537
    %2602 = vmatpush.bf16.msra.mxu0 %v2536
    %2603 = vmatpush.bf16.msra.mxu0 %v2535
    %2604 = vmatpush.bf16.msra.mxu0 %v2534
    %2605 = vmatpush.bf16.msra.mxu0 %v2533
    %2606 = vmatpush.bf16.msra.mxu0 %v2532
    %2607 = vmatpush.bf16.msra.mxu0 %v2531
    %2608 = vmatmul.bf16.gmra.mxu0 %v2325
    %v2609 = vpop.f32.mrf.mxu0
    %v2610 = vadd.f32 %v2597, %v2609
    %v2611 = vpop.f32.mrf.mxu0
    %2612 = vdwg.mxu0
    %2613 = vmatpush.bf16.msra.mxu0 %v2546
    %2614 = vmatpush.bf16.msra.mxu0 %v2545
    %2615 = vmatpush.bf16.msra.mxu0 %v2544
    %2616 = vmatpush.bf16.msra.mxu0 %v2543
    %2617 = vmatpush.bf16.msra.mxu0 %v2542
    %2618 = vmatpush.bf16.msra.mxu0 %v2541
    %2619 = vmatpush.bf16.msra.mxu0 %v2540
    %2620 = vmatpush.bf16.msra.mxu0 %v2539
    %2621 = vmatmul.bf16.gmra.mxu0 %v2326
    %v2622 = vpop.f32.mrf.mxu0
    %v2623 = vadd.f32 %v2610, %v2622
    %v2624 = vpop.f32.mrf.mxu0
    %2625 = vdwg.mxu0
    %2626 = vmatpush.bf16.msra.mxu0 %v2554
    %2627 = vmatpush.bf16.msra.mxu0 %v2553
    %2628 = vmatpush.bf16.msra.mxu0 %v2552
    %2629 = vmatpush.bf16.msra.mxu0 %v2551
    %2630 = vmatpush.bf16.msra.mxu0 %v2550
    %2631 = vmatpush.bf16.msra.mxu0 %v2549
    %2632 = vmatpush.bf16.msra.mxu0 %v2548
    %2633 = vmatpush.bf16.msra.mxu0 %v2547
    %2634 = vmatmul.bf16.gmra.mxu0 %v2327
    %v2635 = vpop.f32.mrf.mxu0
    %v2636 = vadd.f32 %v2623, %v2635
    %v2637 = vpop.f32.mrf.mxu0
    %2638 = vdwg.mxu0
    %2639 = vst [vmem:[%s5] sm:$0xff] %v2636
    // Predicated region
    $region34: #{dqn_blue_forward.1} parent=1 // pred_check
      _
    $region35: #{dqn_blue_forward.1} parent=1 // pred_check_branch
      %2641 = sbr.rel (0) target = $region37
    $region36: #{dqn_blue_forward.1} parent=1 // pred_region
      _
    $region37: #{dqn_blue_forward.1} parent=1 // pred_fallthru
      _
    // Predicated region
    $region38: #{dqn_blue_forward.1} parent=1 // pred_check
      _
    $region39: #{dqn_blue_forward.1} parent=1 // pred_check_branch
      %2643 = sbr.rel (0) target = $region41
    $region40: #{dqn_blue_forward.1} parent=1 // pred_region
      _
    $region41: #{dqn_blue_forward.1} parent=1 // pred_fallthru
      _
    %2644 = vsyncpa [#allocation3], 1
    %2645 = vsyncpa [#allocation5], 1

</llo_original>
